<compile_context>
chip_gen: v7x
topology: tpu7x:2x2x1
jax: 0.10.0
libtpu: 0.0.40
codegen_flags: <defaults>
</compile_context>

<pallas_src>
import math
import jax
import jax.numpy as jnp
from jax import lax
from jax.experimental import pallas as pl
from jax.experimental.pallas import tpu as pltpu

# ---------------------------------------------------------------------------
# Model dimensions (small, consistent with the forward pass)
# ---------------------------------------------------------------------------
B = 2        # batch
S_T = 8      # text sequence length (query length)
S_A = 8      # audio sequence length (key/value length)
D = 32       # embedding / model dim
H = 32       # dense-layer hidden dim
O = 8        # output dim


# ---------------------------------------------------------------------------
# Single fused Pallas kernel: full LAM forward for the whole (tiny) batch.
# Everything lives in VMEM; one invocation, no grid.
# ---------------------------------------------------------------------------
def _lam_kernel(text_ref, audio_ref,
                enc_text_w_ref, enc_audio_w_ref,
                ca_wq_ref, ca_wkv_ref, ca_wo_ref,
                sa_wqkv_ref, sa_wo_ref,
                dense_w_ref, dense_b_ref,
                out_w_ref, out_b_ref,
                out_ref):
    f32 = jnp.float32
    scale = 1.0 / math.sqrt(D)

    text = text_ref[...]      # (B*S_T, D)  batch flattened into sublanes
    audio = audio_ref[...]    # (B*S_A, D)

    # --- "ClapEncoder" stand-in projections (batch-flattened matmuls) ---------
    text_emb = jnp.dot(text, enc_text_w_ref[...], preferred_element_type=f32)
    audio_emb = jnp.dot(audio, enc_audio_w_ref[...], preferred_element_type=f32)

    # --- scaled dot-product attention core (per-batch, statically unrolled) --
    def sdpa(q_all, kv_all, s_q, s_k):
        # q_all: (B*s_q, D);  kv_all: (B*s_k, 2D) with K|V concatenated on lanes
        outs = []
        for b in range(B):
            q = q_all[b * s_q:(b + 1) * s_q, :]           # (s_q, D)
            k = kv_all[b * s_k:(b + 1) * s_k, :D]         # (s_k, D)
            v = kv_all[b * s_k:(b + 1) * s_k, D:]         # (s_k, D)
            # q @ k^T without materializing k.T: contract dim 1 against dim 1
            s = lax.dot_general(q, k, (((1,), (1,)), ((), ())),
                                preferred_element_type=f32) * scale   # (s_q, s_k)
            # numerically-stable softmax over keys
            s_max = jnp.max(s, axis=-1, keepdims=True)
            p = jnp.exp(s - s_max)
            p = p * pl.reciprocal(jnp.sum(p, axis=-1, keepdims=True), approx=True)
            outs.append(jnp.dot(p, v, preferred_element_type=f32))    # (s_q, D)
        return jnp.concatenate(outs, axis=0)              # (B*s_q, D)

    # --- CrossAttention(text_emb, audio_emb, audio_emb) ----------------------
    q_ca = jnp.dot(text_emb, ca_wq_ref[...], preferred_element_type=f32)    # (B*S_T, D)
    kv_ca = jnp.dot(audio_emb, ca_wkv_ref[...], preferred_element_type=f32)  # (B*S_A, 2D)
    cross = jnp.dot(sdpa(q_ca, kv_ca, S_T, S_A), ca_wo_ref[...],
                    preferred_element_type=f32)                              # (B*S_T, D)

    # --- SelfAttention(cross, cross, cross) ----------------------------------
    qkv_sa = jnp.dot(cross, sa_wqkv_ref[...], preferred_element_type=f32)    # (B*S_T, 3D)
    self_out = jnp.dot(sdpa(qkv_sa[:, :D], qkv_sa[:, D:], S_T, S_T),
                       sa_wo_ref[...], preferred_element_type=f32)           # (B*S_T, D)

    # --- DenseLayer: Linear + ReLU -------------------------------------------
    h = jnp.dot(self_out, dense_w_ref[...],
                preferred_element_type=f32) + dense_b_ref[...]               # (B*S_T, H)
    h = jnp.maximum(h, 0.0)

    # --- PoolingLayer: mean over sequence, per batch --------------------------
    inv_s = 1.0 / float(S_T)
    pooled = jnp.concatenate(
        [jnp.sum(h[b * S_T:(b + 1) * S_T, :], axis=0, keepdims=True) * inv_s
         for b in range(B)],
        axis=0)                                                              # (B, H)

    # --- OutputLayer: Linear, single lane-contiguous (B, O) writeback --------
    y = jnp.dot(pooled, out_w_ref[...],
                preferred_element_type=f32) + out_b_ref[...]                 # (B, O)
    out_ref[...] = y.astype(out_ref.dtype)


def lam_pallas(text_flat, audio_flat, params):
    n_in = 13
    return pl.pallas_call(
        _lam_kernel,
        out_shape=jax.ShapeDtypeStruct((B, O), jnp.float32),
        in_specs=[pl.BlockSpec(memory_space=pltpu.MemorySpace.VMEM)] * n_in,
        out_specs=pl.BlockSpec(memory_space=pltpu.MemorySpace.VMEM),
    )(text_flat, audio_flat,
      params["enc_text_w"], params["enc_audio_w"],
      params["ca_wq"], params["ca_wkv"], params["ca_wo"],
      params["sa_wqkv"], params["sa_wo"],
      params["dense_w"], params["dense_b"],
      params["out_w"], params["out_b"])


# ---------------------------------------------------------------------------
# Parameter init (deterministic, synthetic). K|V / Q|K|V projection weights are
# pre-concatenated along the output dim so the kernel does merged matmuls.
# ---------------------------------------------------------------------------
def init_params(key):
    ks = jax.random.split(key, 16)
    scale = 1.0 / math.sqrt(D)

    def w(k, shape):
        return jax.random.normal(k, shape, jnp.float32) * scale

    ca_wk = w(ks[3], (D, D))
    ca_wv = w(ks[4], (D, D))
    sa_wq = w(ks[6], (D, D))
    sa_wk = w(ks[7], (D, D))
    sa_wv = w(ks[8], (D, D))

    params = {
        # "ClapEncoder" stand-in projections (TODO(synk): real CLAP not loadable)
        "enc_text_w": w(ks[0], (D, D)),
        "enc_audio_w": w(ks[1], (D, D)),
        # CrossAttention (K|V merged)
        "ca_wq": w(ks[2], (D, D)),
        "ca_wkv": jnp.concatenate([ca_wk, ca_wv], axis=1),          # (D, 2D)
        "ca_wo": w(ks[5], (D, D)),
        # SelfAttention (Q|K|V merged)
        "sa_wqkv": jnp.concatenate([sa_wq, sa_wk, sa_wv], axis=1),  # (D, 3D)
        "sa_wo": w(ks[9], (D, D)),
        # DenseLayer
        "dense_w": w(ks[10], (D, H)),
        "dense_b": jax.random.normal(ks[11], (1, H), jnp.float32) * 0.01,
        # OutputLayer
        "out_w": w(ks[12], (H, O)),
        "out_b": jax.random.normal(ks[13], (1, O), jnp.float32) * 0.01,
    }
    return params


# ---------------------------------------------------------------------------
# Full LAM forward: one fused Pallas kernel call.
# ---------------------------------------------------------------------------
@jax.jit
def lam_forward(params, text_feat, audio_feat):
    # Flatten batch into the sublane axis (free HBM reshape) so every projection
    # matmul inside the kernel sees (B*S, D) rows.
    text_flat = text_feat.reshape(B * S_T, D)
    audio_flat = audio_feat.reshape(B * S_A, D)
    return lam_pallas(text_flat, audio_flat, params)   # (B, O)


if __name__ == "__main__":
    key = jax.random.PRNGKey(0)
    k_param, k_text, k_audio = jax.random.split(key, 3)

    params = init_params(k_param)
    # synthetic "text" / "audio_path" inputs as pre-featurized tensors
    text_feat = jax.random.normal(k_text, (B, S_T, D), jnp.float32)
    audio_feat = jax.random.normal(k_audio, (B, S_A, D), jnp.float32)

    out = lam_forward(params, text_feat, audio_feat)
    out = jax.block_until_ready(out)
    assert out.shape == (B, O), out.shape
    assert bool(jnp.all(jnp.isfinite(out)))
    print("KERNEL_OK")
</pallas_src>

<mosaic_0001>
module attributes {stable_mosaic.version = 11 : i64} {
  func.func @_lam_kernel(%arg0: memref<16x32xf32, #tpu.memory_space<vmem>>, %arg1: memref<16x32xf32, #tpu.memory_space<vmem>>, %arg2: memref<32x32xf32, #tpu.memory_space<vmem>>, %arg3: memref<32x32xf32, #tpu.memory_space<vmem>>, %arg4: memref<32x32xf32, #tpu.memory_space<vmem>>, %arg5: memref<32x64xf32, #tpu.memory_space<vmem>>, %arg6: memref<32x32xf32, #tpu.memory_space<vmem>>, %arg7: memref<32x96xf32, #tpu.memory_space<vmem>>, %arg8: memref<32x32xf32, #tpu.memory_space<vmem>>, %arg9: memref<32x32xf32, #tpu.memory_space<vmem>>, %arg10: memref<1x32xf32, #tpu.memory_space<vmem>>, %arg11: memref<32x8xf32, #tpu.memory_space<vmem>>, %arg12: memref<1x8xf32, #tpu.memory_space<vmem>>, %arg13: memref<2x8xf32, #tpu.memory_space<vmem>>) attributes {dimension_semantics = [], scalar_prefetch = 0 : i64, scratch_operands = 0 : i64, tpu.core_type = #tpu.core_type<tc>} {
    %c0 = arith.constant 0 : index
    %c0_0 = arith.constant 0 : index
    %0 = vector.load %arg0[%c0, %c0_0] : memref<16x32xf32, #tpu.memory_space<vmem>>, vector<16x32xf32>
    %c0_1 = arith.constant 0 : index
    %c0_2 = arith.constant 0 : index
    %1 = vector.load %arg1[%c0_1, %c0_2] : memref<16x32xf32, #tpu.memory_space<vmem>>, vector<16x32xf32>
    %c0_3 = arith.constant 0 : index
    %c0_4 = arith.constant 0 : index
    %2 = vector.load %arg2[%c0_3, %c0_4] : memref<32x32xf32, #tpu.memory_space<vmem>>, vector<32x32xf32>
    %cst = arith.constant dense<0.000000e+00> : vector<16x32xf32>
    %3 = tpu.matmul %0, %2, %cst {dimension_numbers = #tpu.dot_dimension_numbers<[1], [0], [0], [1], [0, 0, 1, 1], [], []>} : vector<16x32xf32>, vector<32x32xf32>, vector<16x32xf32> -> vector<16x32xf32>
    %c0_5 = arith.constant 0 : index
    %c0_6 = arith.constant 0 : index
    %4 = vector.load %arg3[%c0_5, %c0_6] : memref<32x32xf32, #tpu.memory_space<vmem>>, vector<32x32xf32>
    %cst_7 = arith.constant dense<0.000000e+00> : vector<16x32xf32>
    %5 = tpu.matmul %1, %4, %cst_7 {dimension_numbers = #tpu.dot_dimension_numbers<[1], [0], [0], [1], [0, 0, 1, 1], [], []>} : vector<16x32xf32>, vector<32x32xf32>, vector<16x32xf32> -> vector<16x32xf32>
    %c0_8 = arith.constant 0 : index
    %c0_9 = arith.constant 0 : index
    %6 = vector.load %arg4[%c0_8, %c0_9] : memref<32x32xf32, #tpu.memory_space<vmem>>, vector<32x32xf32>
    %cst_10 = arith.constant dense<0.000000e+00> : vector<16x32xf32>
    %7 = tpu.matmul %3, %6, %cst_10 {dimension_numbers = #tpu.dot_dimension_numbers<[1], [0], [0], [1], [0, 0, 1, 1], [], []>} : vector<16x32xf32>, vector<32x32xf32>, vector<16x32xf32> -> vector<16x32xf32>
    %c0_11 = arith.constant 0 : index
    %c0_12 = arith.constant 0 : index
    %8 = vector.load %arg5[%c0_11, %c0_12] : memref<32x64xf32, #tpu.memory_space<vmem>>, vector<32x64xf32>
    %cst_13 = arith.constant dense<0.000000e+00> : vector<16x64xf32>
    %9 = tpu.matmul %5, %8, %cst_13 {dimension_numbers = #tpu.dot_dimension_numbers<[1], [0], [0], [1], [0, 0, 1, 1], [], []>} : vector<16x32xf32>, vector<32x64xf32>, vector<16x64xf32> -> vector<16x64xf32>
    %10 = vector.extract_strided_slice %7 {offsets = [0, 0], sizes = [8, 32], strides = [1, 1]} : vector<16x32xf32> to vector<8x32xf32>
    %11 = vector.extract_strided_slice %9 {offsets = [0, 0], sizes = [8, 32], strides = [1, 1]} : vector<16x64xf32> to vector<8x32xf32>
    %12 = vector.extract_strided_slice %9 {offsets = [0, 32], sizes = [8, 32], strides = [1, 1]} : vector<16x64xf32> to vector<8x32xf32>
    %cst_14 = arith.constant dense<0.000000e+00> : vector<8x8xf32>
    %13 = tpu.matmul %10, %11, %cst_14 {dimension_numbers = #tpu.dot_dimension_numbers<[1], [1], [0], [0], [0, 0, 1, 0], [], []>} : vector<8x32xf32>, vector<8x32xf32>, vector<8x8xf32> -> vector<8x8xf32>
    %cst_15 = arith.constant 0.176776692 : f32
    %14 = vector.broadcast %cst_15 : f32 to vector<8x8xf32>
    %15 = arith.mulf %13, %14 : vector<8x8xf32>
    %cst_16 = arith.constant dense<0xFF800000> : vector<8xf32>
    %16 = vector.multi_reduction <maximumf>, %15, %cst_16 [1] : vector<8x8xf32> to vector<8xf32>
    %17 = vector.shape_cast %16 : vector<8xf32> to vector<8x1xf32>
    %18 = vector.broadcast %17 : vector<8x1xf32> to vector<8x8xf32>
    %19 = arith.subf %15, %18 : vector<8x8xf32>
    %20 = math.exp %19 : vector<8x8xf32>
    %cst_17 = arith.constant dense<0.000000e+00> : vector<8xf32>
    %21 = vector.multi_reduction <add>, %20, %cst_17 [1] : vector<8x8xf32> to vector<8xf32>
    %22 = vector.shape_cast %21 : vector<8xf32> to vector<8x1xf32>
    %23 = tpu.reciprocal %22 {approx = true} : vector<8x1xf32> -> vector<8x1xf32>
    %24 = vector.broadcast %23 : vector<8x1xf32> to vector<8x8xf32>
    %25 = arith.mulf %20, %24 : vector<8x8xf32>
    %cst_18 = arith.constant dense<0.000000e+00> : vector<8x32xf32>
    %26 = tpu.matmul %25, %12, %cst_18 {dimension_numbers = #tpu.dot_dimension_numbers<[1], [0], [0], [1], [0, 0, 1, 1], [], []>} : vector<8x8xf32>, vector<8x32xf32>, vector<8x32xf32> -> vector<8x32xf32>
    %27 = vector.extract_strided_slice %7 {offsets = [8, 0], sizes = [8, 32], strides = [1, 1]} : vector<16x32xf32> to vector<8x32xf32>
    %28 = vector.extract_strided_slice %9 {offsets = [8, 0], sizes = [8, 32], strides = [1, 1]} : vector<16x64xf32> to vector<8x32xf32>
    %29 = vector.extract_strided_slice %9 {offsets = [8, 32], sizes = [8, 32], strides = [1, 1]} : vector<16x64xf32> to vector<8x32xf32>
    %cst_19 = arith.constant dense<0.000000e+00> : vector<8x8xf32>
    %30 = tpu.matmul %27, %28, %cst_19 {dimension_numbers = #tpu.dot_dimension_numbers<[1], [1], [0], [0], [0, 0, 1, 0], [], []>} : vector<8x32xf32>, vector<8x32xf32>, vector<8x8xf32> -> vector<8x8xf32>
    %cst_20 = arith.constant 0.176776692 : f32
    %31 = vector.broadcast %cst_20 : f32 to vector<8x8xf32>
    %32 = arith.mulf %30, %31 : vector<8x8xf32>
    %cst_21 = arith.constant dense<0xFF800000> : vector<8xf32>
    %33 = vector.multi_reduction <maximumf>, %32, %cst_21 [1] : vector<8x8xf32> to vector<8xf32>
    %34 = vector.shape_cast %33 : vector<8xf32> to vector<8x1xf32>
    %35 = vector.broadcast %34 : vector<8x1xf32> to vector<8x8xf32>
    %36 = arith.subf %32, %35 : vector<8x8xf32>
    %37 = math.exp %36 : vector<8x8xf32>
    %cst_22 = arith.constant dense<0.000000e+00> : vector<8xf32>
    %38 = vector.multi_reduction <add>, %37, %cst_22 [1] : vector<8x8xf32> to vector<8xf32>
    %39 = vector.shape_cast %38 : vector<8xf32> to vector<8x1xf32>
    %40 = tpu.reciprocal %39 {approx = true} : vector<8x1xf32> -> vector<8x1xf32>
    %41 = vector.broadcast %40 : vector<8x1xf32> to vector<8x8xf32>
    %42 = arith.mulf %37, %41 : vector<8x8xf32>
    %cst_23 = arith.constant dense<0.000000e+00> : vector<8x32xf32>
    %43 = tpu.matmul %42, %29, %cst_23 {dimension_numbers = #tpu.dot_dimension_numbers<[1], [0], [0], [1], [0, 0, 1, 1], [], []>} : vector<8x8xf32>, vector<8x32xf32>, vector<8x32xf32> -> vector<8x32xf32>
    %44 = tpu.concatenate %26, %43 in 0 : vector<8x32xf32>, vector<8x32xf32> -> vector<16x32xf32>
    %c0_24 = arith.constant 0 : index
    %c0_25 = arith.constant 0 : index
    %45 = vector.load %arg6[%c0_24, %c0_25] : memref<32x32xf32, #tpu.memory_space<vmem>>, vector<32x32xf32>
    %cst_26 = arith.constant dense<0.000000e+00> : vector<16x32xf32>
    %46 = tpu.matmul %44, %45, %cst_26 {dimension_numbers = #tpu.dot_dimension_numbers<[1], [0], [0], [1], [0, 0, 1, 1], [], []>} : vector<16x32xf32>, vector<32x32xf32>, vector<16x32xf32> -> vector<16x32xf32>
    %c0_27 = arith.constant 0 : index
    %c0_28 = arith.constant 0 : index
    %47 = vector.load %arg7[%c0_27, %c0_28] : memref<32x96xf32, #tpu.memory_space<vmem>>, vector<32x96xf32>
    %cst_29 = arith.constant dense<0.000000e+00> : vector<16x96xf32>
    %48 = tpu.matmul %46, %47, %cst_29 {dimension_numbers = #tpu.dot_dimension_numbers<[1], [0], [0], [1], [0, 0, 1, 1], [], []>} : vector<16x32xf32>, vector<32x96xf32>, vector<16x96xf32> -> vector<16x96xf32>
    %49 = vector.extract_strided_slice %48 {offsets = [0, 0], sizes = [16, 32], strides = [1, 1]} : vector<16x96xf32> to vector<16x32xf32>
    %50 = vector.extract_strided_slice %48 {offsets = [0, 32], sizes = [16, 64], strides = [1, 1]} : vector<16x96xf32> to vector<16x64xf32>
    %51 = vector.extract_strided_slice %49 {offsets = [0, 0], sizes = [8, 32], strides = [1, 1]} : vector<16x32xf32> to vector<8x32xf32>
    %52 = vector.extract_strided_slice %50 {offsets = [0, 0], sizes = [8, 32], strides = [1, 1]} : vector<16x64xf32> to vector<8x32xf32>
    %53 = vector.extract_strided_slice %50 {offsets = [0, 32], sizes = [8, 32], strides = [1, 1]} : vector<16x64xf32> to vector<8x32xf32>
    %cst_30 = arith.constant dense<0.000000e+00> : vector<8x8xf32>
    %54 = tpu.matmul %51, %52, %cst_30 {dimension_numbers = #tpu.dot_dimension_numbers<[1], [1], [0], [0], [0, 0, 1, 0], [], []>} : vector<8x32xf32>, vector<8x32xf32>, vector<8x8xf32> -> vector<8x8xf32>
    %cst_31 = arith.constant 0.176776692 : f32
    %55 = vector.broadcast %cst_31 : f32 to vector<8x8xf32>
    %56 = arith.mulf %54, %55 : vector<8x8xf32>
    %cst_32 = arith.constant dense<0xFF800000> : vector<8xf32>
    %57 = vector.multi_reduction <maximumf>, %56, %cst_32 [1] : vector<8x8xf32> to vector<8xf32>
    %58 = vector.shape_cast %57 : vector<8xf32> to vector<8x1xf32>
    %59 = vector.broadcast %58 : vector<8x1xf32> to vector<8x8xf32>
    %60 = arith.subf %56, %59 : vector<8x8xf32>
    %61 = math.exp %60 : vector<8x8xf32>
    %cst_33 = arith.constant dense<0.000000e+00> : vector<8xf32>
    %62 = vector.multi_reduction <add>, %61, %cst_33 [1] : vector<8x8xf32> to vector<8xf32>
    %63 = vector.shape_cast %62 : vector<8xf32> to vector<8x1xf32>
    %64 = tpu.reciprocal %63 {approx = true} : vector<8x1xf32> -> vector<8x1xf32>
    %65 = vector.broadcast %64 : vector<8x1xf32> to vector<8x8xf32>
    %66 = arith.mulf %61, %65 : vector<8x8xf32>
    %cst_34 = arith.constant dense<0.000000e+00> : vector<8x32xf32>
    %67 = tpu.matmul %66, %53, %cst_34 {dimension_numbers = #tpu.dot_dimension_numbers<[1], [0], [0], [1], [0, 0, 1, 1], [], []>} : vector<8x8xf32>, vector<8x32xf32>, vector<8x32xf32> -> vector<8x32xf32>
    %68 = vector.extract_strided_slice %49 {offsets = [8, 0], sizes = [8, 32], strides = [1, 1]} : vector<16x32xf32> to vector<8x32xf32>
    %69 = vector.extract_strided_slice %50 {offsets = [8, 0], sizes = [8, 32], strides = [1, 1]} : vector<16x64xf32> to vector<8x32xf32>
    %70 = vector.extract_strided_slice %50 {offsets = [8, 32], sizes = [8, 32], strides = [1, 1]} : vector<16x64xf32> to vector<8x32xf32>
    %cst_35 = arith.constant dense<0.000000e+00> : vector<8x8xf32>
    %71 = tpu.matmul %68, %69, %cst_35 {dimension_numbers = #tpu.dot_dimension_numbers<[1], [1], [0], [0], [0, 0, 1, 0], [], []>} : vector<8x32xf32>, vector<8x32xf32>, vector<8x8xf32> -> vector<8x8xf32>
    %cst_36 = arith.constant 0.176776692 : f32
    %72 = vector.broadcast %cst_36 : f32 to vector<8x8xf32>
    %73 = arith.mulf %71, %72 : vector<8x8xf32>
    %cst_37 = arith.constant dense<0xFF800000> : vector<8xf32>
    %74 = vector.multi_reduction <maximumf>, %73, %cst_37 [1] : vector<8x8xf32> to vector<8xf32>
    %75 = vector.shape_cast %74 : vector<8xf32> to vector<8x1xf32>
    %76 = vector.broadcast %75 : vector<8x1xf32> to vector<8x8xf32>
    %77 = arith.subf %73, %76 : vector<8x8xf32>
    %78 = math.exp %77 : vector<8x8xf32>
    %cst_38 = arith.constant dense<0.000000e+00> : vector<8xf32>
    %79 = vector.multi_reduction <add>, %78, %cst_38 [1] : vector<8x8xf32> to vector<8xf32>
    %80 = vector.shape_cast %79 : vector<8xf32> to vector<8x1xf32>
    %81 = tpu.reciprocal %80 {approx = true} : vector<8x1xf32> -> vector<8x1xf32>
    %82 = vector.broadcast %81 : vector<8x1xf32> to vector<8x8xf32>
    %83 = arith.mulf %78, %82 : vector<8x8xf32>
    %cst_39 = arith.constant dense<0.000000e+00> : vector<8x32xf32>
    %84 = tpu.matmul %83, %70, %cst_39 {dimension_numbers = #tpu.dot_dimension_numbers<[1], [0], [0], [1], [0, 0, 1, 1], [], []>} : vector<8x8xf32>, vector<8x32xf32>, vector<8x32xf32> -> vector<8x32xf32>
    %85 = tpu.concatenate %67, %84 in 0 : vector<8x32xf32>, vector<8x32xf32> -> vector<16x32xf32>
    %c0_40 = arith.constant 0 : index
    %c0_41 = arith.constant 0 : index
    %86 = vector.load %arg8[%c0_40, %c0_41] : memref<32x32xf32, #tpu.memory_space<vmem>>, vector<32x32xf32>
    %cst_42 = arith.constant dense<0.000000e+00> : vector<16x32xf32>
    %87 = tpu.matmul %85, %86, %cst_42 {dimension_numbers = #tpu.dot_dimension_numbers<[1], [0], [0], [1], [0, 0, 1, 1], [], []>} : vector<16x32xf32>, vector<32x32xf32>, vector<16x32xf32> -> vector<16x32xf32>
    %c0_43 = arith.constant 0 : index
    %c0_44 = arith.constant 0 : index
    %88 = vector.load %arg9[%c0_43, %c0_44] : memref<32x32xf32, #tpu.memory_space<vmem>>, vector<32x32xf32>
    %cst_45 = arith.constant dense<0.000000e+00> : vector<16x32xf32>
    %89 = tpu.matmul %87, %88, %cst_45 {dimension_numbers = #tpu.dot_dimension_numbers<[1], [0], [0], [1], [0, 0, 1, 1], [], []>} : vector<16x32xf32>, vector<32x32xf32>, vector<16x32xf32> -> vector<16x32xf32>
    %c0_46 = arith.constant 0 : index
    %c0_47 = arith.constant 0 : index
    %90 = vector.load %arg10[%c0_46, %c0_47] : memref<1x32xf32, #tpu.memory_space<vmem>>, vector<1x32xf32>
    %91 = vector.broadcast %90 : vector<1x32xf32> to vector<16x32xf32>
    %92 = arith.addf %89, %91 : vector<16x32xf32>
    %cst_48 = arith.constant 0.000000e+00 : f32
    %93 = vector.broadcast %cst_48 : f32 to vector<16x32xf32>
    %94 = arith.maximumf %92, %93 : vector<16x32xf32>
    %95 = vector.extract_strided_slice %94 {offsets = [0, 0], sizes = [8, 32], strides = [1, 1]} : vector<16x32xf32> to vector<8x32xf32>
    %cst_49 = arith.constant dense<0.000000e+00> : vector<32xf32>
    %96 = vector.multi_reduction <add>, %95, %cst_49 [0] : vector<8x32xf32> to vector<32xf32>
    %97 = vector.shape_cast %96 : vector<32xf32> to vector<1x32xf32>
    %cst_50 = arith.constant 1.250000e-01 : f32
    %98 = vector.broadcast %cst_50 : f32 to vector<1x32xf32>
    %99 = arith.mulf %97, %98 : vector<1x32xf32>
    %100 = vector.extract_strided_slice %94 {offsets = [8, 0], sizes = [8, 32], strides = [1, 1]} : vector<16x32xf32> to vector<8x32xf32>
    %cst_51 = arith.constant dense<0.000000e+00> : vector<32xf32>
    %101 = vector.multi_reduction <add>, %100, %cst_51 [0] : vector<8x32xf32> to vector<32xf32>
    %102 = vector.shape_cast %101 : vector<32xf32> to vector<1x32xf32>
    %cst_52 = arith.constant 1.250000e-01 : f32
    %103 = vector.broadcast %cst_52 : f32 to vector<1x32xf32>
    %104 = arith.mulf %102, %103 : vector<1x32xf32>
    %105 = tpu.concatenate %99, %104 in 0 : vector<1x32xf32>, vector<1x32xf32> -> vector<2x32xf32>
    %c0_53 = arith.constant 0 : index
    %c0_54 = arith.constant 0 : index
    %106 = vector.load %arg11[%c0_53, %c0_54] : memref<32x8xf32, #tpu.memory_space<vmem>>, vector<32x8xf32>
    %cst_55 = arith.constant dense<0.000000e+00> : vector<2x8xf32>
    %107 = tpu.matmul %105, %106, %cst_55 {dimension_numbers = #tpu.dot_dimension_numbers<[1], [0], [0], [1], [0, 0, 1, 1], [], []>} : vector<2x32xf32>, vector<32x8xf32>, vector<2x8xf32> -> vector<2x8xf32>
    %c0_56 = arith.constant 0 : index
    %c0_57 = arith.constant 0 : index
    %108 = vector.load %arg12[%c0_56, %c0_57] : memref<1x8xf32, #tpu.memory_space<vmem>>, vector<1x8xf32>
    %109 = vector.broadcast %108 : vector<1x8xf32> to vector<2x8xf32>
    %110 = arith.addf %107, %109 : vector<2x8xf32>
    %c0_58 = arith.constant 0 : index
    %c0_59 = arith.constant 0 : index
    %111 = vector.load %arg13[%c0_58, %c0_59] : memref<2x8xf32, #tpu.memory_space<vmem>>, vector<2x8xf32>
    tpu.vector_store %arg13[%c0_58, %c0_59], %110 {strides = array<i32>} : memref<2x8xf32, #tpu.memory_space<vmem>>, vector<2x8xf32>,
    return
  }
}

</mosaic_0001>

<llo_original>
// kernel: lam_forward.1
$region0: #{lam_forward.1}
  #allocation0 [shape = 'u32[]', space=smem, size = 0x4, offset = 0x4, fixed_abs, tag = 'smem constant byte address 0x4 - core index']
  #allocation1 [shape = 'u32[144,128]{1,0:T(1,128)}', space=vmem, size = 0x12000, scoped, tag = 'internal scratch']
  %s0 = inlined_call_operand.vmem [shape: f32[16,32], index: 0, kind: input, shape index: {}]
  %s1 = inlined_call_operand.hbm [shape: f32[16,32], index: 1, kind: input, shape index: {}]
  %s2 = inlined_call_operand.vmem [shape: f32[32,32], index: 2, kind: input, shape index: {}]
  %s3 = inlined_call_operand.vmem [shape: f32[32,32], index: 3, kind: input, shape index: {}]
  %s4 = inlined_call_operand.hbm [shape: f32[32,32], index: 4, kind: input, shape index: {}]
  %s5 = inlined_call_operand.hbm [shape: f32[32,64], index: 5, kind: input, shape index: {}]
  %s6 = inlined_call_operand.hbm [shape: f32[32,32], index: 6, kind: input, shape index: {}]
  %s7 = inlined_call_operand.hbm [shape: f32[32,96], index: 7, kind: input, shape index: {}]
  %s8 = inlined_call_operand.hbm [shape: f32[32,32], index: 8, kind: input, shape index: {}]
  %s9 = inlined_call_operand.hbm [shape: f32[32,32], index: 9, kind: input, shape index: {}]
  %s10 = inlined_call_operand.vmem [shape: f32[1,32], index: 10, kind: input, shape index: {}]
  %s11 = inlined_call_operand.vmem [shape: f32[32,8], index: 11, kind: input, shape index: {}]
  %s12 = inlined_call_operand.hbm [shape: f32[1,8], index: 12, kind: input, shape index: {}]
  %s13 = inlined_call_operand.hbm [shape: f32[2,8], index: 13, kind: output, shape index: {}]
  %s14 = sld [smem:[#allocation0]]
  $region94: #{lam_forward.1} parent=0
    _
  %s16 = ssub.s32 1, %s14
  %s17 = scalar_select 0, %s16, %s14
  $region1: #{lam_forward.1} parent=0
    #allocation2 [shape = 'u8[8192]{0}', space=vmem, size = 0x2000, scoped, tag = 'input window, operand 1, single buffered']
    #allocation3 [shape = 's32[1]{0}', space=sflag, size = 0x4, scoped, tag = 'scoped memory for lam_forward.1']
    #allocation4 [shape = 's32[1]{0}', space=sflag, size = 0x4, scoped, tag = 'scoped memory for lam_forward.1']
    #allocation5 [shape = 'u8[16384]{0}', space=vmem, size = 0x4000, scoped, tag = 'input window, operand 4, single buffered']
    #allocation6 [shape = 's32[1]{0}', space=sflag, size = 0x4, scoped, tag = 'scoped memory for lam_forward.1']
    #allocation7 [shape = 'u8[16384]{0}', space=vmem, size = 0x4000, scoped, tag = 'input window, operand 5, single buffered']
    #allocation8 [shape = 'u8[16384]{0}', space=vmem, size = 0x4000, scoped, tag = 'input window, operand 6, single buffered']
    #allocation9 [shape = 's32[1]{0}', space=sflag, size = 0x4, scoped, tag = 'scoped memory for lam_forward.1']
    #allocation10 [shape = 'u8[16384]{0}', space=vmem, size = 0x4000, scoped, tag = 'input window, operand 7, single buffered']
    #allocation11 [shape = 'u8[16384]{0}', space=vmem, size = 0x4000, scoped, tag = 'input window, operand 8, single buffered']
    #allocation12 [shape = 's32[1]{0}', space=sflag, size = 0x4, scoped, tag = 'scoped memory for lam_forward.1']
    #allocation13 [shape = 'u8[16384]{0}', space=vmem, size = 0x4000, scoped, tag = 'input window, operand 9, single buffered']
    #allocation14 [shape = 'u8[512]{0}', space=vmem, size = 0x400, scoped, tag = 'input window, operand 12, single buffered']
    #allocation15 [shape = 's32[1]{0}', space=sflag, size = 0x4, scoped, tag = 'scoped memory for lam_forward.1']
    #allocation16 [shape = 'u8[1024]{0}', space=vmem, size = 0x400, scoped, tag = 'output window, operand 0, single buffered']
    %18 = vsyncpa [#allocation3], 0
    %19 = vsyncpa [#allocation6], 0
    %20 = vsyncpa [#allocation9], 0
    %21 = vsyncpa [#allocation12], 0
    %22 = vsyncpa [#allocation15], 0
    %23 = vsyncpa [#allocation4], 0
    // Predicated region
    $region2: #{lam_forward.1} parent=1 // pred_check
      _
    $region3: #{lam_forward.1} parent=1 // pred_check_branch
      %25 = sbr.rel (0) target = $region5
    $region4: #{lam_forward.1} parent=1 // pred_region
      _
    $region5: #{lam_forward.1} parent=1 // pred_fallthru
      _
    // Predicated region
    $region6: #{lam_forward.1} parent=1 // pred_check
      _
    $region7: #{lam_forward.1} parent=1 // pred_check_branch
      %27 = sbr.rel (0) target = $region9
    $region8: #{lam_forward.1} parent=1 // pred_region
      %s29 = ssub.s32 256, 256
      %30 = vsyncadd [#allocation3], %s29
      %s31 = sshll.u32 [#allocation2], 4
      %s32 = int_to_ptr.vmem [resolvable:$true] %s31
      %37 = dma.hbm_to_vmem [thread:$0]  %s1, 256, %s32, [#allocation3], 128, 128, 8
    $region9: #{lam_forward.1} parent=1 // pred_fallthru
      _
    // Predicated region
    $region10: #{lam_forward.1} parent=1 // pred_check
      _
    $region11: #{lam_forward.1} parent=1 // pred_check_branch
      %39 = sbr.rel (0) target = $region13
    $region12: #{lam_forward.1} parent=1 // pred_region
      _
    $region13: #{lam_forward.1} parent=1 // pred_fallthru
      _
    // Predicated region
    $region14: #{lam_forward.1} parent=1 // pred_check
      _
    $region15: #{lam_forward.1} parent=1 // pred_check_branch
      %41 = sbr.rel (0) target = $region17
    $region16: #{lam_forward.1} parent=1 // pred_region
      _
    $region17: #{lam_forward.1} parent=1 // pred_fallthru
      _
    // Predicated region
    $region18: #{lam_forward.1} parent=1 // pred_check
      _
    $region19: #{lam_forward.1} parent=1 // pred_check_branch
      %43 = sbr.rel (0) target = $region21
    $region20: #{lam_forward.1} parent=1 // pred_region
      %s45 = ssub.s32 512, 512
      %46 = vsyncadd [#allocation6], %s45
      %s47 = sshll.u32 [#allocation5], 4
      %s48 = int_to_ptr.vmem [resolvable:$true] %s47
      %53 = dma.hbm_to_vmem [thread:$0]  %s4, 512, %s48, [#allocation6], 128, 128, 8
    $region21: #{lam_forward.1} parent=1 // pred_fallthru
      _
    // Predicated region
    $region22: #{lam_forward.1} parent=1 // pred_check
      _
    $region23: #{lam_forward.1} parent=1 // pred_check_branch
      %55 = sbr.rel (0) target = $region25
    $region24: #{lam_forward.1} parent=1 // pred_region
      %s57 = ssub.s32 512, 512
      %58 = vsyncadd [#allocation6], %s57
      %s59 = sshll.u32 [#allocation7], 4
      %s60 = int_to_ptr.vmem [resolvable:$true] %s59
      %65 = dma.hbm_to_vmem [thread:$0]  %s5, 512, %s60, [#allocation6], 128, 128, 8
    $region25: #{lam_forward.1} parent=1 // pred_fallthru
      _
    // Predicated region
    $region26: #{lam_forward.1} parent=1 // pred_check
      _
    $region27: #{lam_forward.1} parent=1 // pred_check_branch
      %67 = sbr.rel (0) target = $region29
    $region28: #{lam_forward.1} parent=1 // pred_region
      %s69 = ssub.s32 512, 512
      %70 = vsyncadd [#allocation9], %s69
      %s71 = sshll.u32 [#allocation8], 4
      %s72 = int_to_ptr.vmem [resolvable:$true] %s71
      %77 = dma.hbm_to_vmem [thread:$0]  %s6, 512, %s72, [#allocation9], 128, 128, 8
    $region29: #{lam_forward.1} parent=1 // pred_fallthru
      _
    // Predicated region
    $region30: #{lam_forward.1} parent=1 // pred_check
      _
    $region31: #{lam_forward.1} parent=1 // pred_check_branch
      %79 = sbr.rel (0) target = $region33
    $region32: #{lam_forward.1} parent=1 // pred_region
      %s81 = ssub.s32 512, 512
      %82 = vsyncadd [#allocation9], %s81
      %s83 = sshll.u32 [#allocation10], 4
      %s84 = int_to_ptr.vmem [resolvable:$true] %s83
      %89 = dma.hbm_to_vmem [thread:$0]  %s7, 512, %s84, [#allocation9], 128, 128, 8
    $region33: #{lam_forward.1} parent=1 // pred_fallthru
      _
    // Predicated region
    $region34: #{lam_forward.1} parent=1 // pred_check
      _
    $region35: #{lam_forward.1} parent=1 // pred_check_branch
      %91 = sbr.rel (0) target = $region37
    $region36: #{lam_forward.1} parent=1 // pred_region
      %s93 = ssub.s32 512, 512
      %94 = vsyncadd [#allocation12], %s93
      %s95 = sshll.u32 [#allocation11], 4
      %s96 = int_to_ptr.vmem [resolvable:$true] %s95
      %101 = dma.hbm_to_vmem [thread:$0]  %s8, 512, %s96, [#allocation12], 128, 128, 8
    $region37: #{lam_forward.1} parent=1 // pred_fallthru
      _
    // Predicated region
    $region38: #{lam_forward.1} parent=1 // pred_check
      _
    $region39: #{lam_forward.1} parent=1 // pred_check_branch
      %103 = sbr.rel (0) target = $region41
    $region40: #{lam_forward.1} parent=1 // pred_region
      %s105 = ssub.s32 512, 512
      %106 = vsyncadd [#allocation12], %s105
      %s107 = sshll.u32 [#allocation13], 4
      %s108 = int_to_ptr.vmem [resolvable:$true] %s107
      %113 = dma.hbm_to_vmem [thread:$0]  %s9, 512, %s108, [#allocation12], 128, 128, 8
    $region41: #{lam_forward.1} parent=1 // pred_fallthru
      _
    // Predicated region
    $region42: #{lam_forward.1} parent=1 // pred_check
      _
    $region43: #{lam_forward.1} parent=1 // pred_check_branch
      %115 = sbr.rel (0) target = $region45
    $region44: #{lam_forward.1} parent=1 // pred_region
      _
    $region45: #{lam_forward.1} parent=1 // pred_fallthru
      _
    // Predicated region
    $region46: #{lam_forward.1} parent=1 // pred_check
      _
    $region47: #{lam_forward.1} parent=1 // pred_check_branch
      %117 = sbr.rel (0) target = $region49
    $region48: #{lam_forward.1} parent=1 // pred_region
      _
    $region49: #{lam_forward.1} parent=1 // pred_fallthru
      _
    // Predicated region
    $region50: #{lam_forward.1} parent=1 // pred_check
      _
    $region51: #{lam_forward.1} parent=1 // pred_check_branch
      %119 = sbr.rel (0) target = $region53
    $region52: #{lam_forward.1} parent=1 // pred_region
      %s121 = ssub.s32 16, 16
      %122 = vsyncadd [#allocation15], %s121
      %s124 = sshll.u32 [#allocation14], 4
      %s125 = int_to_ptr.vmem [resolvable:$true] %s124
      %127 = dma.hbm_to_vmem [thread:$0]  %s12, 16, %s125, [#allocation15]
    $region53: #{lam_forward.1} parent=1 // pred_fallthru
      _
    // Predicated region
    $region54: #{lam_forward.1} parent=1 // pred_check
      _
    $region55: #{lam_forward.1} parent=1 // pred_check_branch
      %129 = sbr.rel (0) target = $region57
    $region56: #{lam_forward.1} parent=1 // pred_region
      %130 = dma.done [#allocation3], 256
    $region57: #{lam_forward.1} parent=1 // pred_fallthru
      _
    // Predicated region
    $region58: #{lam_forward.1} parent=1 // pred_check
      _
    $region59: #{lam_forward.1} parent=1 // pred_check_branch
      %132 = sbr.rel (0) target = $region61
    $region60: #{lam_forward.1} parent=1 // pred_region
      %133 = dma.done [#allocation6], 512
    $region61: #{lam_forward.1} parent=1 // pred_fallthru
      _
    // Predicated region
    $region62: #{lam_forward.1} parent=1 // pred_check
      _
    $region63: #{lam_forward.1} parent=1 // pred_check_branch
      %135 = sbr.rel (0) target = $region65
    $region64: #{lam_forward.1} parent=1 // pred_region
      %136 = dma.done [#allocation6], 512
    $region65: #{lam_forward.1} parent=1 // pred_fallthru
      _
    // Predicated region
    $region66: #{lam_forward.1} parent=1 // pred_check
      _
    $region67: #{lam_forward.1} parent=1 // pred_check_branch
      %138 = sbr.rel (0) target = $region69
    $region68: #{lam_forward.1} parent=1 // pred_region
      %139 = dma.done [#allocation9], 512
    $region69: #{lam_forward.1} parent=1 // pred_fallthru
      _
    // Predicated region
    $region70: #{lam_forward.1} parent=1 // pred_check
      _
    $region71: #{lam_forward.1} parent=1 // pred_check_branch
      %141 = sbr.rel (0) target = $region73
    $region72: #{lam_forward.1} parent=1 // pred_region
      %142 = dma.done [#allocation9], 512
    $region73: #{lam_forward.1} parent=1 // pred_fallthru
      _
    // Predicated region
    $region74: #{lam_forward.1} parent=1 // pred_check
      _
    $region75: #{lam_forward.1} parent=1 // pred_check_branch
      %144 = sbr.rel (0) target = $region77
    $region76: #{lam_forward.1} parent=1 // pred_region
      %145 = dma.done [#allocation12], 512
    $region77: #{lam_forward.1} parent=1 // pred_fallthru
      _
    // Predicated region
    $region78: #{lam_forward.1} parent=1 // pred_check
      _
    $region79: #{lam_forward.1} parent=1 // pred_check_branch
      %147 = sbr.rel (0) target = $region81
    $region80: #{lam_forward.1} parent=1 // pred_region
      %148 = dma.done [#allocation12], 512
    $region81: #{lam_forward.1} parent=1 // pred_fallthru
      _
    // Predicated region
    $region82: #{lam_forward.1} parent=1 // pred_check
      _
    $region83: #{lam_forward.1} parent=1 // pred_check_branch
      %150 = sbr.rel (0) target = $region85
    $region84: #{lam_forward.1} parent=1 // pred_region
      %151 = dma.done [#allocation15], 16
    $region85: #{lam_forward.1} parent=1 // pred_fallthru
      _
    %v152 = vld [vmem:[%s0] sm:$0xff]
    %v153 = vld [vmem:[%s0 + $0x8] sm:$0xff]
    %v154 = vld [vmem:[#allocation2] sm:$0xff]
    %v155 = vld [vmem:[#allocation2 + $0x8] sm:$0xff]
    %v156 = vld [vmem:[%s2] sm:$0xff]
    %v157 = vld [vmem:[%s2 + $0x8] sm:$0xff]
    %v158 = vld [vmem:[%s2 + $0x10] sm:$0xff]
    %v159 = vld [vmem:[%s2 + $0x18] sm:$0xff]
    %vm160 = vcmask 261120
    %v162 = vsel %vm160, %v152, 0
    %v165 = vsel %vm160, %v153, 0
    %167 = vmatprep.subr.mxu0 0.0
    %168 = vmatpush1.msra.mxu0 %v156
    %169 = vmatprep.subr.mxu0 0.0
    %170 = vmatpush1.msra.mxu0 %v157
    %171 = vmatprep.subr.mxu0 0.0
    %172 = vmatpush1.msra.mxu0 %v158
    %173 = vmatprep.subr.mxu0 0.0
    %174 = vmatpush1.msra.mxu0 %v159
    %175 = vmatprep.subr.mxu0 0.0
    %176 = vmatpush1.msra.mxu0 0.0
    %177 = vmatprep.subr.mxu0 0.0
    %178 = vmatpush1.msra.mxu0 0.0
    %179 = vmatprep.subr.mxu0 0.0
    %180 = vmatpush1.msra.mxu0 0.0
    %181 = vmatprep.subr.mxu0 0.0
    %182 = vmatpush1.msra.mxu0 0.0
    %183 = vmatprep.subr.mxu0 0.0
    %184 = vmatpush1.msra.mxu0 0.0
    %185 = vmatprep.subr.mxu0 0.0
    %186 = vmatpush1.msra.mxu0 0.0
    %187 = vmatprep.subr.mxu0 0.0
    %188 = vmatpush1.msra.mxu0 0.0
    %189 = vmatprep.subr.mxu0 0.0
    %190 = vmatpush1.msra.mxu0 0.0
    %191 = vmatprep.subr.mxu0 0.0
    %192 = vmatpush1.msra.mxu0 0.0
    %193 = vmatprep.subr.mxu0 0.0
    %194 = vmatpush1.msra.mxu0 0.0
    %195 = vmatprep.subr.mxu0 0.0
    %196 = vmatpush1.msra.mxu0 0.0
    %197 = vmatprep.subr.mxu0 0.0
    %198 = vmatpush1.msra.mxu0 0.0
    %199 = vmatprep.subr.mxu0 0.0
    %200 = vmatpush1.msra.mxu0 0.0
    %201 = vmatprep.subr.mxu0 0.0
    %202 = vmatpush1.msra.mxu0 0.0
    %203 = vmatprep.subr.mxu0 0.0
    %204 = vmatpush1.msra.mxu0 0.0
    %205 = vmatprep.subr.mxu0 0.0
    %206 = vmatpush1.msra.mxu0 0.0
    %207 = vmatprep.subr.mxu0 0.0
    %208 = vmatpush1.msra.mxu0 0.0
    %209 = vmatprep.subr.mxu0 0.0
    %210 = vmatpush1.msra.mxu0 0.0
    %211 = vmatprep.subr.mxu0 0.0
    %212 = vmatpush1.msra.mxu0 0.0
    %213 = vmatprep.subr.mxu0 0.0
    %214 = vmatpush1.msra.mxu0 0.0
    %215 = vmatprep.subr.mxu0 0.0
    %216 = vmatpush1.msra.mxu0 0.0
    %217 = vmatprep.subr.mxu0 0.0
    %218 = vmatpush1.msra.mxu0 0.0
    %219 = vmatprep.subr.mxu0 0.0
    %220 = vmatpush1.msra.mxu0 0.0
    %221 = vmatprep.subr.mxu0 0.0
    %222 = vmatpush1.msra.mxu0 0.0
    %223 = vmatprep.subr.mxu0 0.0
    %224 = vmatpush1.msra.mxu0 0.0
    %225 = vmatprep.subr.mxu0 0.0
    %226 = vmatpush1.msra.mxu0 0.0
    %227 = vmatprep.subr.mxu0 0.0
    %228 = vmatpush1.msra.mxu0 0.0
    %229 = vmatprep.subr.mxu0 0.0
    %230 = vmatpush1.msra.mxu0 0.0
    %231 = vmatprep.mubr.f32.mxu0 0.0
    %232 = vmatmul.mubr.f32.gmra.mrb[0].mxu0 %v162
    %v233 = vpop.f32.mrb[0].mxu0
    %v234 = vadd.f32 0.0, %v233
    %v235 = vpop.f32.mrb[0].mxu0
    %236 = vmatprep.mubr.f32.mxu0 0.0
    %237 = vmatmul.mubr.f32.gmra.mrb[0].mxu0 %v165
    %v238 = vpop.f32.mrb[0].mxu0
    %v239 = vadd.f32 0.0, %v238
    %v240 = vpop.f32.mrb[0].mxu0
    %241 = vdwg.mxu0
    %v242 = vld [vmem:[%s3] sm:$0xff]
    %v243 = vld [vmem:[%s3 + $0x8] sm:$0xff]
    %v244 = vld [vmem:[%s3 + $0x10] sm:$0xff]
    %v245 = vld [vmem:[%s3 + $0x18] sm:$0xff]
    %v247 = vsel %vm160, %v154, 0
    %v250 = vsel %vm160, %v155, 0
    %252 = vmatprep.subr.mxu0 0.0
    %253 = vmatpush1.msra.mxu0 %v242
    %254 = vmatprep.subr.mxu0 0.0
    %255 = vmatpush1.msra.mxu0 %v243
    %256 = vmatprep.subr.mxu0 0.0
    %257 = vmatpush1.msra.mxu0 %v244
    %258 = vmatprep.subr.mxu0 0.0
    %259 = vmatpush1.msra.mxu0 %v245
    %260 = vmatprep.subr.mxu0 0.0
    %261 = vmatpush1.msra.mxu0 0.0
    %262 = vmatprep.subr.mxu0 0.0
    %263 = vmatpush1.msra.mxu0 0.0
    %264 = vmatprep.subr.mxu0 0.0
    %265 = vmatpush1.msra.mxu0 0.0
    %266 = vmatprep.subr.mxu0 0.0
    %267 = vmatpush1.msra.mxu0 0.0
    %268 = vmatprep.subr.mxu0 0.0
    %269 = vmatpush1.msra.mxu0 0.0
    %270 = vmatprep.subr.mxu0 0.0
    %271 = vmatpush1.msra.mxu0 0.0
    %272 = vmatprep.subr.mxu0 0.0
    %273 = vmatpush1.msra.mxu0 0.0
    %274 = vmatprep.subr.mxu0 0.0
    %275 = vmatpush1.msra.mxu0 0.0
    %276 = vmatprep.subr.mxu0 0.0
    %277 = vmatpush1.msra.mxu0 0.0
    %278 = vmatprep.subr.mxu0 0.0
    %279 = vmatpush1.msra.mxu0 0.0
    %280 = vmatprep.subr.mxu0 0.0
    %281 = vmatpush1.msra.mxu0 0.0
    %282 = vmatprep.subr.mxu0 0.0
    %283 = vmatpush1.msra.mxu0 0.0
    %284 = vmatprep.subr.mxu0 0.0
    %285 = vmatpush1.msra.mxu0 0.0
    %286 = vmatprep.subr.mxu0 0.0
    %287 = vmatpush1.msra.mxu0 0.0
    %288 = vmatprep.subr.mxu0 0.0
    %289 = vmatpush1.msra.mxu0 0.0
    %290 = vmatprep.subr.mxu0 0.0
    %291 = vmatpush1.msra.mxu0 0.0
    %292 = vmatprep.subr.mxu0 0.0
    %293 = vmatpush1.msra.mxu0 0.0
    %294 = vmatprep.subr.mxu0 0.0
    %295 = vmatpush1.msra.mxu0 0.0
    %296 = vmatprep.subr.mxu0 0.0
    %297 = vmatpush1.msra.mxu0 0.0
    %298 = vmatprep.subr.mxu0 0.0
    %299 = vmatpush1.msra.mxu0 0.0
    %300 = vmatprep.subr.mxu0 0.0
    %301 = vmatpush1.msra.mxu0 0.0
    %302 = vmatprep.subr.mxu0 0.0
    %303 = vmatpush1.msra.mxu0 0.0
    %304 = vmatprep.subr.mxu0 0.0
    %305 = vmatpush1.msra.mxu0 0.0
    %306 = vmatprep.subr.mxu0 0.0
    %307 = vmatpush1.msra.mxu0 0.0
    %308 = vmatprep.subr.mxu0 0.0
    %309 = vmatpush1.msra.mxu0 0.0
    %310 = vmatprep.subr.mxu0 0.0
    %311 = vmatpush1.msra.mxu0 0.0
    %312 = vmatprep.subr.mxu0 0.0
    %313 = vmatpush1.msra.mxu0 0.0
    %314 = vmatprep.subr.mxu0 0.0
    %315 = vmatpush1.msra.mxu0 0.0
    %316 = vmatprep.mubr.f32.mxu0 0.0
    %317 = vmatmul.mubr.f32.gmra.mrb[0].mxu0 %v247
    %v318 = vpop.f32.mrb[0].mxu0
    %v319 = vadd.f32 0.0, %v318
    %v320 = vpop.f32.mrb[0].mxu0
    %321 = vmatprep.mubr.f32.mxu0 0.0
    %322 = vmatmul.mubr.f32.gmra.mrb[0].mxu0 %v250
    %v323 = vpop.f32.mrb[0].mxu0
    %v324 = vadd.f32 0.0, %v323
    %v325 = vpop.f32.mrb[0].mxu0
    %326 = vdwg.mxu0
    %v327 = vld [vmem:[#allocation5] sm:$0xff]
    %v328 = vld [vmem:[#allocation5 + $0x8] sm:$0xff]
    %v329 = vld [vmem:[#allocation5 + $0x10] sm:$0xff]
    %v330 = vld [vmem:[#allocation5 + $0x18] sm:$0xff]
    %v332 = vsel %vm160, %v234, 0
    %v335 = vsel %vm160, %v239, 0
    %337 = vmatprep.subr.mxu0 0.0
    %338 = vmatpush1.msra.mxu0 %v327
    %339 = vmatprep.subr.mxu0 0.0
    %340 = vmatpush1.msra.mxu0 %v328
    %341 = vmatprep.subr.mxu0 0.0
    %342 = vmatpush1.msra.mxu0 %v329
    %343 = vmatprep.subr.mxu0 0.0
    %344 = vmatpush1.msra.mxu0 %v330
    %345 = vmatprep.subr.mxu0 0.0
    %346 = vmatpush1.msra.mxu0 0.0
    %347 = vmatprep.subr.mxu0 0.0
    %348 = vmatpush1.msra.mxu0 0.0
    %349 = vmatprep.subr.mxu0 0.0
    %350 = vmatpush1.msra.mxu0 0.0
    %351 = vmatprep.subr.mxu0 0.0
    %352 = vmatpush1.msra.mxu0 0.0
    %353 = vmatprep.subr.mxu0 0.0
    %354 = vmatpush1.msra.mxu0 0.0
    %355 = vmatprep.subr.mxu0 0.0
    %356 = vmatpush1.msra.mxu0 0.0
    %357 = vmatprep.subr.mxu0 0.0
    %358 = vmatpush1.msra.mxu0 0.0
    %359 = vmatprep.subr.mxu0 0.0
    %360 = vmatpush1.msra.mxu0 0.0
    %361 = vmatprep.subr.mxu0 0.0
    %362 = vmatpush1.msra.mxu0 0.0
    %363 = vmatprep.subr.mxu0 0.0
    %364 = vmatpush1.msra.mxu0 0.0
    %365 = vmatprep.subr.mxu0 0.0
    %366 = vmatpush1.msra.mxu0 0.0
    %367 = vmatprep.subr.mxu0 0.0
    %368 = vmatpush1.msra.mxu0 0.0
    %369 = vmatprep.subr.mxu0 0.0
    %370 = vmatpush1.msra.mxu0 0.0
    %371 = vmatprep.subr.mxu0 0.0
    %372 = vmatpush1.msra.mxu0 0.0
    %373 = vmatprep.subr.mxu0 0.0
    %374 = vmatpush1.msra.mxu0 0.0
    %375 = vmatprep.subr.mxu0 0.0
    %376 = vmatpush1.msra.mxu0 0.0
    %377 = vmatprep.subr.mxu0 0.0
    %378 = vmatpush1.msra.mxu0 0.0
    %379 = vmatprep.subr.mxu0 0.0
    %380 = vmatpush1.msra.mxu0 0.0
    %381 = vmatprep.subr.mxu0 0.0
    %382 = vmatpush1.msra.mxu0 0.0
    %383 = vmatprep.subr.mxu0 0.0
    %384 = vmatpush1.msra.mxu0 0.0
    %385 = vmatprep.subr.mxu0 0.0
    %386 = vmatpush1.msra.mxu0 0.0
    %387 = vmatprep.subr.mxu0 0.0
    %388 = vmatpush1.msra.mxu0 0.0
    %389 = vmatprep.subr.mxu0 0.0
    %390 = vmatpush1.msra.mxu0 0.0
    %391 = vmatprep.subr.mxu0 0.0
    %392 = vmatpush1.msra.mxu0 0.0
    %393 = vmatprep.subr.mxu0 0.0
    %394 = vmatpush1.msra.mxu0 0.0
    %395 = vmatprep.subr.mxu0 0.0
    %396 = vmatpush1.msra.mxu0 0.0
    %397 = vmatprep.subr.mxu0 0.0
    %398 = vmatpush1.msra.mxu0 0.0
    %399 = vmatprep.subr.mxu0 0.0
    %400 = vmatpush1.msra.mxu0 0.0
    %401 = vmatprep.mubr.f32.mxu0 0.0
    %402 = vmatmul.mubr.f32.gmra.mrb[0].mxu0 %v332
    %v403 = vpop.f32.mrb[0].mxu0
    %v404 = vadd.f32 0.0, %v403
    %v405 = vpop.f32.mrb[0].mxu0
    %406 = vmatprep.mubr.f32.mxu0 0.0
    %407 = vmatmul.mubr.f32.gmra.mrb[0].mxu0 %v335
    %v408 = vpop.f32.mrb[0].mxu0
    %v409 = vadd.f32 0.0, %v408
    %v410 = vpop.f32.mrb[0].mxu0
    %411 = vdwg.mxu0
    %v412 = vld [vmem:[#allocation7] sm:$0xff]
    %v413 = vld [vmem:[#allocation7 + $0x8] sm:$0xff]
    %v414 = vld [vmem:[#allocation7 + $0x10] sm:$0xff]
    %v415 = vld [vmem:[#allocation7 + $0x18] sm:$0xff]
    %v417 = vsel %vm160, %v319, 0
    %v420 = vsel %vm160, %v324, 0
    %422 = vmatprep.subr.mxu0 0.0
    %423 = vmatpush1.msra.mxu0 %v412
    %424 = vmatprep.subr.mxu0 0.0
    %425 = vmatpush1.msra.mxu0 %v413
    %426 = vmatprep.subr.mxu0 0.0
    %427 = vmatpush1.msra.mxu0 %v414
    %428 = vmatprep.subr.mxu0 0.0
    %429 = vmatpush1.msra.mxu0 %v415
    %430 = vmatprep.subr.mxu0 0.0
    %431 = vmatpush1.msra.mxu0 0.0
    %432 = vmatprep.subr.mxu0 0.0
    %433 = vmatpush1.msra.mxu0 0.0
    %434 = vmatprep.subr.mxu0 0.0
    %435 = vmatpush1.msra.mxu0 0.0
    %436 = vmatprep.subr.mxu0 0.0
    %437 = vmatpush1.msra.mxu0 0.0
    %438 = vmatprep.subr.mxu0 0.0
    %439 = vmatpush1.msra.mxu0 0.0
    %440 = vmatprep.subr.mxu0 0.0
    %441 = vmatpush1.msra.mxu0 0.0
    %442 = vmatprep.subr.mxu0 0.0
    %443 = vmatpush1.msra.mxu0 0.0
    %444 = vmatprep.subr.mxu0 0.0
    %445 = vmatpush1.msra.mxu0 0.0
    %446 = vmatprep.subr.mxu0 0.0
    %447 = vmatpush1.msra.mxu0 0.0
    %448 = vmatprep.subr.mxu0 0.0
    %449 = vmatpush1.msra.mxu0 0.0
    %450 = vmatprep.subr.mxu0 0.0
    %451 = vmatpush1.msra.mxu0 0.0
    %452 = vmatprep.subr.mxu0 0.0
    %453 = vmatpush1.msra.mxu0 0.0
    %454 = vmatprep.subr.mxu0 0.0
    %455 = vmatpush1.msra.mxu0 0.0
    %456 = vmatprep.subr.mxu0 0.0
    %457 = vmatpush1.msra.mxu0 0.0
    %458 = vmatprep.subr.mxu0 0.0
    %459 = vmatpush1.msra.mxu0 0.0
    %460 = vmatprep.subr.mxu0 0.0
    %461 = vmatpush1.msra.mxu0 0.0
    %462 = vmatprep.subr.mxu0 0.0
    %463 = vmatpush1.msra.mxu0 0.0
    %464 = vmatprep.subr.mxu0 0.0
    %465 = vmatpush1.msra.mxu0 0.0
    %466 = vmatprep.subr.mxu0 0.0
    %467 = vmatpush1.msra.mxu0 0.0
    %468 = vmatprep.subr.mxu0 0.0
    %469 = vmatpush1.msra.mxu0 0.0
    %470 = vmatprep.subr.mxu0 0.0
    %471 = vmatpush1.msra.mxu0 0.0
    %472 = vmatprep.subr.mxu0 0.0
    %473 = vmatpush1.msra.mxu0 0.0
    %474 = vmatprep.subr.mxu0 0.0
    %475 = vmatpush1.msra.mxu0 0.0
    %476 = vmatprep.subr.mxu0 0.0
    %477 = vmatpush1.msra.mxu0 0.0
    %478 = vmatprep.subr.mxu0 0.0
    %479 = vmatpush1.msra.mxu0 0.0
    %480 = vmatprep.subr.mxu0 0.0
    %481 = vmatpush1.msra.mxu0 0.0
    %482 = vmatprep.subr.mxu0 0.0
    %483 = vmatpush1.msra.mxu0 0.0
    %484 = vmatprep.subr.mxu0 0.0
    %485 = vmatpush1.msra.mxu0 0.0
    %486 = vmatprep.mubr.f32.mxu0 0.0
    %487 = vmatmul.mubr.f32.gmra.mrb[0].mxu0 %v417
    %v488 = vpop.f32.mrb[0].mxu0
    %v489 = vadd.f32 0.0, %v488
    %v490 = vpop.f32.mrb[0].mxu0
    %491 = vmatprep.mubr.f32.mxu0 0.0
    %492 = vmatmul.mubr.f32.gmra.mrb[0].mxu0 %v420
    %v493 = vpop.f32.mrb[0].mxu0
    %v494 = vadd.f32 0.0, %v493
    %v495 = vpop.f32.mrb[0].mxu0
    %496 = vdwg.mxu0
    %v498 = vsel %vm160, %v404, 0
    %v501 = vsel %vm160, %v489, 0
    %503 = vmatprep.subr.mxu0 0.0
    %504 = vmatpush1.xpose.msra.mxu0 %v501
    %505 = vmatprep.subr.mxu0 0.0
    %506 = vmatpush1.xpose.msra.mxu0 0.0
    %507 = vmatprep.subr.mxu0 0.0
    %508 = vmatpush1.xpose.msra.mxu0 0.0
    %509 = vmatprep.subr.mxu0 0.0
    %510 = vmatpush1.xpose.msra.mxu0 0.0
    %511 = vmatprep.subr.mxu0 0.0
    %512 = vmatpush1.xpose.msra.mxu0 0.0
    %513 = vmatprep.subr.mxu0 0.0
    %514 = vmatpush1.xpose.msra.mxu0 0.0
    %515 = vmatprep.subr.mxu0 0.0
    %516 = vmatpush1.xpose.msra.mxu0 0.0
    %517 = vmatprep.subr.mxu0 0.0
    %518 = vmatpush1.xpose.msra.mxu0 0.0
    %519 = vmatprep.subr.mxu0 0.0
    %520 = vmatpush1.xpose.msra.mxu0 0.0
    %521 = vmatprep.subr.mxu0 0.0
    %522 = vmatpush1.xpose.msra.mxu0 0.0
    %523 = vmatprep.subr.mxu0 0.0
    %524 = vmatpush1.xpose.msra.mxu0 0.0
    %525 = vmatprep.subr.mxu0 0.0
    %526 = vmatpush1.xpose.msra.mxu0 0.0
    %527 = vmatprep.subr.mxu0 0.0
    %528 = vmatpush1.xpose.msra.mxu0 0.0
    %529 = vmatprep.subr.mxu0 0.0
    %530 = vmatpush1.xpose.msra.mxu0 0.0
    %531 = vmatprep.subr.mxu0 0.0
    %532 = vmatpush1.xpose.msra.mxu0 0.0
    %533 = vmatprep.subr.mxu0 0.0
    %534 = vmatpush1.xpose.msra.mxu0 0.0
    %535 = vmatprep.subr.mxu0 0.0
    %536 = vmatpush1.xpose.msra.mxu0 0.0
    %537 = vmatprep.subr.mxu0 0.0
    %538 = vmatpush1.xpose.msra.mxu0 0.0
    %539 = vmatprep.subr.mxu0 0.0
    %540 = vmatpush1.xpose.msra.mxu0 0.0
    %541 = vmatprep.subr.mxu0 0.0
    %542 = vmatpush1.xpose.msra.mxu0 0.0
    %543 = vmatprep.subr.mxu0 0.0
    %544 = vmatpush1.xpose.msra.mxu0 0.0
    %545 = vmatprep.subr.mxu0 0.0
    %546 = vmatpush1.xpose.msra.mxu0 0.0
    %547 = vmatprep.subr.mxu0 0.0
    %548 = vmatpush1.xpose.msra.mxu0 0.0
    %549 = vmatprep.subr.mxu0 0.0
    %550 = vmatpush1.xpose.msra.mxu0 0.0
    %551 = vmatprep.subr.mxu0 0.0
    %552 = vmatpush1.xpose.msra.mxu0 0.0
    %553 = vmatprep.subr.mxu0 0.0
    %554 = vmatpush1.xpose.msra.mxu0 0.0
    %555 = vmatprep.subr.mxu0 0.0
    %556 = vmatpush1.xpose.msra.mxu0 0.0
    %557 = vmatprep.subr.mxu0 0.0
    %558 = vmatpush1.xpose.msra.mxu0 0.0
    %559 = vmatprep.subr.mxu0 0.0
    %560 = vmatpush1.xpose.msra.mxu0 0.0
    %561 = vmatprep.subr.mxu0 0.0
    %562 = vmatpush1.xpose.msra.mxu0 0.0
    %563 = vmatprep.subr.mxu0 0.0
    %564 = vmatpush1.xpose.msra.mxu0 0.0
    %565 = vmatprep.subr.mxu0 0.0
    %566 = vmatpush1.xpose.msra.mxu0 0.0
    %567 = vmatprep.mubr.f32.mxu0 0.0
    %568 = vmatmul.mubr.f32.gmra.mrb[0].mxu0 %v498
    %v569 = vpop.f32.mrb[0].mxu0
    %v570 = vadd.f32 0.0, %v569
    %v571 = vpop.f32.mrb[0].mxu0
    %572 = vdwg.mxu0
    %v573 = vmul.f32 %v570, 0.17677669
    %vm574 = vcmask 64512
    %v575 = vsel %vm574, %v573, -inf
    %576 = vmax.xlane.f32.xlu0 %v575
    %v577 = vpop.xlane.xlu0 %576
    %v578 = vsub.f32 %v573, %v577
    %v579 = vmul.f32 %v578, 1.442695
    %v580 = vpow.pop %v579
    %v581 = vsel %vm574, %v580, 0.0
    %582 = vadd.xlane.f32.xlu0 %v581
    %v583 = vpop.xlane.xlu0 %582
    %v584 = vrcp.pop %v583
    %v585 = vmul.f32 %v580, %v584
    %586 = vrot.lane.b32.xlu0 %v489, 96
    %v587 = vpop.permute.xlu0 %586
    %v590 = vsel %vm574, %v585, 0
    %592 = vmatprep.subr.mxu0 0.0
    %593 = vmatpush1.msra.mxu0 %v587
    %594 = vmatprep.subr.mxu0 0.0
    %595 = vmatpush1.msra.mxu0 0.0
    %596 = vmatprep.subr.mxu0 0.0
    %597 = vmatpush1.msra.mxu0 0.0
    %598 = vmatprep.subr.mxu0 0.0
    %599 = vmatpush1.msra.mxu0 0.0
    %600 = vmatprep.subr.mxu0 0.0
    %601 = vmatpush1.msra.mxu0 0.0
    %602 = vmatprep.subr.mxu0 0.0
    %603 = vmatpush1.msra.mxu0 0.0
    %604 = vmatprep.subr.mxu0 0.0
    %605 = vmatpush1.msra.mxu0 0.0
    %606 = vmatprep.subr.mxu0 0.0
    %607 = vmatpush1.msra.mxu0 0.0
    %608 = vmatprep.subr.mxu0 0.0
    %609 = vmatpush1.msra.mxu0 0.0
    %610 = vmatprep.subr.mxu0 0.0
    %611 = vmatpush1.msra.mxu0 0.0
    %612 = vmatprep.subr.mxu0 0.0
    %613 = vmatpush1.msra.mxu0 0.0
    %614 = vmatprep.subr.mxu0 0.0
    %615 = vmatpush1.msra.mxu0 0.0
    %616 = vmatprep.subr.mxu0 0.0
    %617 = vmatpush1.msra.mxu0 0.0
    %618 = vmatprep.subr.mxu0 0.0
    %619 = vmatpush1.msra.mxu0 0.0
    %620 = vmatprep.subr.mxu0 0.0
    %621 = vmatpush1.msra.mxu0 0.0
    %622 = vmatprep.subr.mxu0 0.0
    %623 = vmatpush1.msra.mxu0 0.0
    %624 = vmatprep.subr.mxu0 0.0
    %625 = vmatpush1.msra.mxu0 0.0
    %626 = vmatprep.subr.mxu0 0.0
    %627 = vmatpush1.msra.mxu0 0.0
    %628 = vmatprep.subr.mxu0 0.0
    %629 = vmatpush1.msra.mxu0 0.0
    %630 = vmatprep.subr.mxu0 0.0
    %631 = vmatpush1.msra.mxu0 0.0
    %632 = vmatprep.subr.mxu0 0.0
    %633 = vmatpush1.msra.mxu0 0.0
    %634 = vmatprep.subr.mxu0 0.0
    %635 = vmatpush1.msra.mxu0 0.0
    %636 = vmatprep.subr.mxu0 0.0
    %637 = vmatpush1.msra.mxu0 0.0
    %638 = vmatprep.subr.mxu0 0.0
    %639 = vmatpush1.msra.mxu0 0.0
    %640 = vmatprep.subr.mxu0 0.0
    %641 = vmatpush1.msra.mxu0 0.0
    %642 = vmatprep.subr.mxu0 0.0
    %643 = vmatpush1.msra.mxu0 0.0
    %644 = vmatprep.subr.mxu0 0.0
    %645 = vmatpush1.msra.mxu0 0.0
    %646 = vmatprep.subr.mxu0 0.0
    %647 = vmatpush1.msra.mxu0 0.0
    %648 = vmatprep.subr.mxu0 0.0
    %649 = vmatpush1.msra.mxu0 0.0
    %650 = vmatprep.subr.mxu0 0.0
    %651 = vmatpush1.msra.mxu0 0.0
    %652 = vmatprep.subr.mxu0 0.0
    %653 = vmatpush1.msra.mxu0 0.0
    %654 = vmatprep.subr.mxu0 0.0
    %655 = vmatpush1.msra.mxu0 0.0
    %656 = vmatprep.mubr.f32.mxu0 0.0
    %657 = vmatmul.mubr.f32.gmra.mrb[0].mxu0 %v590
    %v658 = vpop.f32.mrb[0].mxu0
    %v659 = vadd.f32 0.0, %v658
    %v660 = vpop.f32.mrb[0].mxu0
    %661 = vdwg.mxu0
    %v663 = vsel %vm160, %v409, 0
    %v666 = vsel %vm160, %v494, 0
    %668 = vmatprep.subr.mxu0 0.0
    %669 = vmatpush1.xpose.msra.mxu0 %v666
    %670 = vmatprep.subr.mxu0 0.0
    %671 = vmatpush1.xpose.msra.mxu0 0.0
    %672 = vmatprep.subr.mxu0 0.0
    %673 = vmatpush1.xpose.msra.mxu0 0.0
    %674 = vmatprep.subr.mxu0 0.0
    %675 = vmatpush1.xpose.msra.mxu0 0.0
    %676 = vmatprep.subr.mxu0 0.0
    %677 = vmatpush1.xpose.msra.mxu0 0.0
    %678 = vmatprep.subr.mxu0 0.0
    %679 = vmatpush1.xpose.msra.mxu0 0.0
    %680 = vmatprep.subr.mxu0 0.0
    %681 = vmatpush1.xpose.msra.mxu0 0.0
    %682 = vmatprep.subr.mxu0 0.0
    %683 = vmatpush1.xpose.msra.mxu0 0.0
    %684 = vmatprep.subr.mxu0 0.0
    %685 = vmatpush1.xpose.msra.mxu0 0.0
    %686 = vmatprep.subr.mxu0 0.0
    %687 = vmatpush1.xpose.msra.mxu0 0.0
    %688 = vmatprep.subr.mxu0 0.0
    %689 = vmatpush1.xpose.msra.mxu0 0.0
    %690 = vmatprep.subr.mxu0 0.0
    %691 = vmatpush1.xpose.msra.mxu0 0.0
    %692 = vmatprep.subr.mxu0 0.0
    %693 = vmatpush1.xpose.msra.mxu0 0.0
    %694 = vmatprep.subr.mxu0 0.0
    %695 = vmatpush1.xpose.msra.mxu0 0.0
    %696 = vmatprep.subr.mxu0 0.0
    %697 = vmatpush1.xpose.msra.mxu0 0.0
    %698 = vmatprep.subr.mxu0 0.0
    %699 = vmatpush1.xpose.msra.mxu0 0.0
    %700 = vmatprep.subr.mxu0 0.0
    %701 = vmatpush1.xpose.msra.mxu0 0.0
    %702 = vmatprep.subr.mxu0 0.0
    %703 = vmatpush1.xpose.msra.mxu0 0.0
    %704 = vmatprep.subr.mxu0 0.0
    %705 = vmatpush1.xpose.msra.mxu0 0.0
    %706 = vmatprep.subr.mxu0 0.0
    %707 = vmatpush1.xpose.msra.mxu0 0.0
    %708 = vmatprep.subr.mxu0 0.0
    %709 = vmatpush1.xpose.msra.mxu0 0.0
    %710 = vmatprep.subr.mxu0 0.0
    %711 = vmatpush1.xpose.msra.mxu0 0.0
    %712 = vmatprep.subr.mxu0 0.0
    %713 = vmatpush1.xpose.msra.mxu0 0.0
    %714 = vmatprep.subr.mxu0 0.0
    %715 = vmatpush1.xpose.msra.mxu0 0.0
    %716 = vmatprep.subr.mxu0 0.0
    %717 = vmatpush1.xpose.msra.mxu0 0.0
    %718 = vmatprep.subr.mxu0 0.0
    %719 = vmatpush1.xpose.msra.mxu0 0.0
    %720 = vmatprep.subr.mxu0 0.0
    %721 = vmatpush1.xpose.msra.mxu0 0.0
    %722 = vmatprep.subr.mxu0 0.0
    %723 = vmatpush1.xpose.msra.mxu0 0.0
    %724 = vmatprep.subr.mxu0 0.0
    %725 = vmatpush1.xpose.msra.mxu0 0.0
    %726 = vmatprep.subr.mxu0 0.0
    %727 = vmatpush1.xpose.msra.mxu0 0.0
    %728 = vmatprep.subr.mxu0 0.0
    %729 = vmatpush1.xpose.msra.mxu0 0.0
    %730 = vmatprep.subr.mxu0 0.0
    %731 = vmatpush1.xpose.msra.mxu0 0.0
    %732 = vmatprep.mubr.f32.mxu0 0.0
    %733 = vmatmul.mubr.f32.gmra.mrb[0].mxu0 %v663
    %v734 = vpop.f32.mrb[0].mxu0
    %v735 = vadd.f32 0.0, %v734
    %v736 = vpop.f32.mrb[0].mxu0
    %737 = vdwg.mxu0
    %v738 = vmul.f32 %v735, 0.17677669
    %v739 = vsel %vm574, %v738, -inf
    %740 = vmax.xlane.f32.xlu0 %v739
    %v741 = vpop.xlane.xlu0 %740
    %v742 = vsub.f32 %v738, %v741
    %v743 = vmul.f32 %v742, 1.442695
    %v744 = vpow.pop %v743
    %v745 = vsel %vm574, %v744, 0.0
    %746 = vadd.xlane.f32.xlu0 %v745
    %v747 = vpop.xlane.xlu0 %746
    %v748 = vrcp.pop %v747
    %v749 = vmul.f32 %v744, %v748
    %750 = vrot.lane.b32.xlu0 %v494, 96
    %v751 = vpop.permute.xlu0 %750
    %v754 = vsel %vm574, %v749, 0
    %756 = vmatprep.subr.mxu0 0.0
    %757 = vmatpush1.msra.mxu0 %v751
    %758 = vmatprep.subr.mxu0 0.0
    %759 = vmatpush1.msra.mxu0 0.0
    %760 = vmatprep.subr.mxu0 0.0
    %761 = vmatpush1.msra.mxu0 0.0
    %762 = vmatprep.subr.mxu0 0.0
    %763 = vmatpush1.msra.mxu0 0.0
    %764 = vmatprep.subr.mxu0 0.0
    %765 = vmatpush1.msra.mxu0 0.0
    %766 = vmatprep.subr.mxu0 0.0
    %767 = vmatpush1.msra.mxu0 0.0
    %768 = vmatprep.subr.mxu0 0.0
    %769 = vmatpush1.msra.mxu0 0.0
    %770 = vmatprep.subr.mxu0 0.0
    %771 = vmatpush1.msra.mxu0 0.0
    %772 = vmatprep.subr.mxu0 0.0
    %773 = vmatpush1.msra.mxu0 0.0
    %774 = vmatprep.subr.mxu0 0.0
    %775 = vmatpush1.msra.mxu0 0.0
    %776 = vmatprep.subr.mxu0 0.0
    %777 = vmatpush1.msra.mxu0 0.0
    %778 = vmatprep.subr.mxu0 0.0
    %779 = vmatpush1.msra.mxu0 0.0
    %780 = vmatprep.subr.mxu0 0.0
    %781 = vmatpush1.msra.mxu0 0.0
    %782 = vmatprep.subr.mxu0 0.0
    %783 = vmatpush1.msra.mxu0 0.0
    %784 = vmatprep.subr.mxu0 0.0
    %785 = vmatpush1.msra.mxu0 0.0
    %786 = vmatprep.subr.mxu0 0.0
    %787 = vmatpush1.msra.mxu0 0.0
    %788 = vmatprep.subr.mxu0 0.0
    %789 = vmatpush1.msra.mxu0 0.0
    %790 = vmatprep.subr.mxu0 0.0
    %791 = vmatpush1.msra.mxu0 0.0
    %792 = vmatprep.subr.mxu0 0.0
    %793 = vmatpush1.msra.mxu0 0.0
    %794 = vmatprep.subr.mxu0 0.0
    %795 = vmatpush1.msra.mxu0 0.0
    %796 = vmatprep.subr.mxu0 0.0
    %797 = vmatpush1.msra.mxu0 0.0
    %798 = vmatprep.subr.mxu0 0.0
    %799 = vmatpush1.msra.mxu0 0.0
    %800 = vmatprep.subr.mxu0 0.0
    %801 = vmatpush1.msra.mxu0 0.0
    %802 = vmatprep.subr.mxu0 0.0
    %803 = vmatpush1.msra.mxu0 0.0
    %804 = vmatprep.subr.mxu0 0.0
    %805 = vmatpush1.msra.mxu0 0.0
    %806 = vmatprep.subr.mxu0 0.0
    %807 = vmatpush1.msra.mxu0 0.0
    %808 = vmatprep.subr.mxu0 0.0
    %809 = vmatpush1.msra.mxu0 0.0
    %810 = vmatprep.subr.mxu0 0.0
    %811 = vmatpush1.msra.mxu0 0.0
    %812 = vmatprep.subr.mxu0 0.0
    %813 = vmatpush1.msra.mxu0 0.0
    %814 = vmatprep.subr.mxu0 0.0
    %815 = vmatpush1.msra.mxu0 0.0
    %816 = vmatprep.subr.mxu0 0.0
    %817 = vmatpush1.msra.mxu0 0.0
    %818 = vmatprep.subr.mxu0 0.0
    %819 = vmatpush1.msra.mxu0 0.0
    %820 = vmatprep.mubr.f32.mxu0 0.0
    %821 = vmatmul.mubr.f32.gmra.mrb[0].mxu0 %v754
    %v822 = vpop.f32.mrb[0].mxu0
    %v823 = vadd.f32 0.0, %v822
    %v824 = vpop.f32.mrb[0].mxu0
    %825 = vdwg.mxu0
    %v826 = vld [vmem:[#allocation8] sm:$0xff]
    %v827 = vld [vmem:[#allocation8 + $0x8] sm:$0xff]
    %v828 = vld [vmem:[#allocation8 + $0x10] sm:$0xff]
    %v829 = vld [vmem:[#allocation8 + $0x18] sm:$0xff]
    %v831 = vsel %vm160, %v659, 0
    %v834 = vsel %vm160, %v823, 0
    %836 = vmatprep.subr.mxu0 0.0
    %837 = vmatpush1.msra.mxu0 %v826
    %838 = vmatprep.subr.mxu0 0.0
    %839 = vmatpush1.msra.mxu0 %v827
    %840 = vmatprep.subr.mxu0 0.0
    %841 = vmatpush1.msra.mxu0 %v828
    %842 = vmatprep.subr.mxu0 0.0
    %843 = vmatpush1.msra.mxu0 %v829
    %844 = vmatprep.subr.mxu0 0.0
    %845 = vmatpush1.msra.mxu0 0.0
    %846 = vmatprep.subr.mxu0 0.0
    %847 = vmatpush1.msra.mxu0 0.0
    %848 = vmatprep.subr.mxu0 0.0
    %849 = vmatpush1.msra.mxu0 0.0
    %850 = vmatprep.subr.mxu0 0.0
    %851 = vmatpush1.msra.mxu0 0.0
    %852 = vmatprep.subr.mxu0 0.0
    %853 = vmatpush1.msra.mxu0 0.0
    %854 = vmatprep.subr.mxu0 0.0
    %855 = vmatpush1.msra.mxu0 0.0
    %856 = vmatprep.subr.mxu0 0.0
    %857 = vmatpush1.msra.mxu0 0.0
    %858 = vmatprep.subr.mxu0 0.0
    %859 = vmatpush1.msra.mxu0 0.0
    %860 = vmatprep.subr.mxu0 0.0
    %861 = vmatpush1.msra.mxu0 0.0
    %862 = vmatprep.subr.mxu0 0.0
    %863 = vmatpush1.msra.mxu0 0.0
    %864 = vmatprep.subr.mxu0 0.0
    %865 = vmatpush1.msra.mxu0 0.0
    %866 = vmatprep.subr.mxu0 0.0
    %867 = vmatpush1.msra.mxu0 0.0
    %868 = vmatprep.subr.mxu0 0.0
    %869 = vmatpush1.msra.mxu0 0.0
    %870 = vmatprep.subr.mxu0 0.0
    %871 = vmatpush1.msra.mxu0 0.0
    %872 = vmatprep.subr.mxu0 0.0
    %873 = vmatpush1.msra.mxu0 0.0
    %874 = vmatprep.subr.mxu0 0.0
    %875 = vmatpush1.msra.mxu0 0.0
    %876 = vmatprep.subr.mxu0 0.0
    %877 = vmatpush1.msra.mxu0 0.0
    %878 = vmatprep.subr.mxu0 0.0
    %879 = vmatpush1.msra.mxu0 0.0
    %880 = vmatprep.subr.mxu0 0.0
    %881 = vmatpush1.msra.mxu0 0.0
    %882 = vmatprep.subr.mxu0 0.0
    %883 = vmatpush1.msra.mxu0 0.0
    %884 = vmatprep.subr.mxu0 0.0
    %885 = vmatpush1.msra.mxu0 0.0
    %886 = vmatprep.subr.mxu0 0.0
    %887 = vmatpush1.msra.mxu0 0.0
    %888 = vmatprep.subr.mxu0 0.0
    %889 = vmatpush1.msra.mxu0 0.0
    %890 = vmatprep.subr.mxu0 0.0
    %891 = vmatpush1.msra.mxu0 0.0
    %892 = vmatprep.subr.mxu0 0.0
    %893 = vmatpush1.msra.mxu0 0.0
    %894 = vmatprep.subr.mxu0 0.0
    %895 = vmatpush1.msra.mxu0 0.0
    %896 = vmatprep.subr.mxu0 0.0
    %897 = vmatpush1.msra.mxu0 0.0
    %898 = vmatprep.subr.mxu0 0.0
    %899 = vmatpush1.msra.mxu0 0.0
    %900 = vmatprep.mubr.f32.mxu0 0.0
    %901 = vmatmul.mubr.f32.gmra.mrb[0].mxu0 %v831
    %v902 = vpop.f32.mrb[0].mxu0
    %v903 = vadd.f32 0.0, %v902
    %v904 = vpop.f32.mrb[0].mxu0
    %905 = vmatprep.mubr.f32.mxu0 0.0
    %906 = vmatmul.mubr.f32.gmra.mrb[0].mxu0 %v834
    %v907 = vpop.f32.mrb[0].mxu0
    %v908 = vadd.f32 0.0, %v907
    %v909 = vpop.f32.mrb[0].mxu0
    %910 = vdwg.mxu0
    %v911 = vld [vmem:[#allocation10] sm:$0xff]
    %v912 = vld [vmem:[#allocation10 + $0x8] sm:$0xff]
    %v913 = vld [vmem:[#allocation10 + $0x10] sm:$0xff]
    %v914 = vld [vmem:[#allocation10 + $0x18] sm:$0xff]
    %v916 = vsel %vm160, %v903, 0
    %v919 = vsel %vm160, %v908, 0
    %921 = vmatprep.subr.mxu0 0.0
    %922 = vmatpush1.msra.mxu0 %v911
    %923 = vmatprep.subr.mxu0 0.0
    %924 = vmatpush1.msra.mxu0 %v912
    %925 = vmatprep.subr.mxu0 0.0
    %926 = vmatpush1.msra.mxu0 %v913
    %927 = vmatprep.subr.mxu0 0.0
    %928 = vmatpush1.msra.mxu0 %v914
    %929 = vmatprep.subr.mxu0 0.0
    %930 = vmatpush1.msra.mxu0 0.0
    %931 = vmatprep.subr.mxu0 0.0
    %932 = vmatpush1.msra.mxu0 0.0
    %933 = vmatprep.subr.mxu0 0.0
    %934 = vmatpush1.msra.mxu0 0.0
    %935 = vmatprep.subr.mxu0 0.0
    %936 = vmatpush1.msra.mxu0 0.0
    %937 = vmatprep.subr.mxu0 0.0
    %938 = vmatpush1.msra.mxu0 0.0
    %939 = vmatprep.subr.mxu0 0.0
    %940 = vmatpush1.msra.mxu0 0.0
    %941 = vmatprep.subr.mxu0 0.0
    %942 = vmatpush1.msra.mxu0 0.0
    %943 = vmatprep.subr.mxu0 0.0
    %944 = vmatpush1.msra.mxu0 0.0
    %945 = vmatprep.subr.mxu0 0.0
    %946 = vmatpush1.msra.mxu0 0.0
    %947 = vmatprep.subr.mxu0 0.0
    %948 = vmatpush1.msra.mxu0 0.0
    %949 = vmatprep.subr.mxu0 0.0
    %950 = vmatpush1.msra.mxu0 0.0
    %951 = vmatprep.subr.mxu0 0.0
    %952 = vmatpush1.msra.mxu0 0.0
    %953 = vmatprep.subr.mxu0 0.0
    %954 = vmatpush1.msra.mxu0 0.0
    %955 = vmatprep.subr.mxu0 0.0
    %956 = vmatpush1.msra.mxu0 0.0
    %957 = vmatprep.subr.mxu0 0.0
    %958 = vmatpush1.msra.mxu0 0.0
    %959 = vmatprep.subr.mxu0 0.0
    %960 = vmatpush1.msra.mxu0 0.0
    %961 = vmatprep.subr.mxu0 0.0
    %962 = vmatpush1.msra.mxu0 0.0
    %963 = vmatprep.subr.mxu0 0.0
    %964 = vmatpush1.msra.mxu0 0.0
    %965 = vmatprep.subr.mxu0 0.0
    %966 = vmatpush1.msra.mxu0 0.0
    %967 = vmatprep.subr.mxu0 0.0
    %968 = vmatpush1.msra.mxu0 0.0
    %969 = vmatprep.subr.mxu0 0.0
    %970 = vmatpush1.msra.mxu0 0.0
    %971 = vmatprep.subr.mxu0 0.0
    %972 = vmatpush1.msra.mxu0 0.0
    %973 = vmatprep.subr.mxu0 0.0
    %974 = vmatpush1.msra.mxu0 0.0
    %975 = vmatprep.subr.mxu0 0.0
    %976 = vmatpush1.msra.mxu0 0.0
    %977 = vmatprep.subr.mxu0 0.0
    %978 = vmatpush1.msra.mxu0 0.0
    %979 = vmatprep.subr.mxu0 0.0
    %980 = vmatpush1.msra.mxu0 0.0
    %981 = vmatprep.subr.mxu0 0.0
    %982 = vmatpush1.msra.mxu0 0.0
    %983 = vmatprep.subr.mxu0 0.0
    %984 = vmatpush1.msra.mxu0 0.0
    %985 = vmatprep.mubr.f32.mxu0 0.0
    %986 = vmatmul.mubr.f32.gmra.mrb[0].mxu0 %v916
    %v987 = vpop.f32.mrb[0].mxu0
    %v988 = vadd.f32 0.0, %v987
    %v989 = vpop.f32.mrb[0].mxu0
    %990 = vmatprep.mubr.f32.mxu0 0.0
    %991 = vmatmul.mubr.f32.gmra.mrb[0].mxu0 %v919
    %v992 = vpop.f32.mrb[0].mxu0
    %v993 = vadd.f32 0.0, %v992
    %v994 = vpop.f32.mrb[0].mxu0
    %995 = vdwg.mxu0
    %997 = vrot.lane.b32.xlu0 %v988, 96
    %v998 = vpop.permute.xlu0 %997
    %v999 = vsel %vm160, %v988, 0
    %v1001 = vsel %vm160, %v998, 0
    %1003 = vmatprep.subr.mxu0 0.0
    %1004 = vmatpush1.xpose.msra.mxu0 %v1001
    %1005 = vmatprep.subr.mxu0 0.0
    %1006 = vmatpush1.xpose.msra.mxu0 0.0
    %1007 = vmatprep.subr.mxu0 0.0
    %1008 = vmatpush1.xpose.msra.mxu0 0.0
    %1009 = vmatprep.subr.mxu0 0.0
    %1010 = vmatpush1.xpose.msra.mxu0 0.0
    %1011 = vmatprep.subr.mxu0 0.0
    %1012 = vmatpush1.xpose.msra.mxu0 0.0
    %1013 = vmatprep.subr.mxu0 0.0
    %1014 = vmatpush1.xpose.msra.mxu0 0.0
    %1015 = vmatprep.subr.mxu0 0.0
    %1016 = vmatpush1.xpose.msra.mxu0 0.0
    %1017 = vmatprep.subr.mxu0 0.0
    %1018 = vmatpush1.xpose.msra.mxu0 0.0
    %1019 = vmatprep.subr.mxu0 0.0
    %1020 = vmatpush1.xpose.msra.mxu0 0.0
    %1021 = vmatprep.subr.mxu0 0.0
    %1022 = vmatpush1.xpose.msra.mxu0 0.0
    %1023 = vmatprep.subr.mxu0 0.0
    %1024 = vmatpush1.xpose.msra.mxu0 0.0
    %1025 = vmatprep.subr.mxu0 0.0
    %1026 = vmatpush1.xpose.msra.mxu0 0.0
    %1027 = vmatprep.subr.mxu0 0.0
    %1028 = vmatpush1.xpose.msra.mxu0 0.0
    %1029 = vmatprep.subr.mxu0 0.0
    %1030 = vmatpush1.xpose.msra.mxu0 0.0
    %1031 = vmatprep.subr.mxu0 0.0
    %1032 = vmatpush1.xpose.msra.mxu0 0.0
    %1033 = vmatprep.subr.mxu0 0.0
    %1034 = vmatpush1.xpose.msra.mxu0 0.0
    %1035 = vmatprep.subr.mxu0 0.0
    %1036 = vmatpush1.xpose.msra.mxu0 0.0
    %1037 = vmatprep.subr.mxu0 0.0
    %1038 = vmatpush1.xpose.msra.mxu0 0.0
    %1039 = vmatprep.subr.mxu0 0.0
    %1040 = vmatpush1.xpose.msra.mxu0 0.0
    %1041 = vmatprep.subr.mxu0 0.0
    %1042 = vmatpush1.xpose.msra.mxu0 0.0
    %1043 = vmatprep.subr.mxu0 0.0
    %1044 = vmatpush1.xpose.msra.mxu0 0.0
    %1045 = vmatprep.subr.mxu0 0.0
    %1046 = vmatpush1.xpose.msra.mxu0 0.0
    %1047 = vmatprep.subr.mxu0 0.0
    %1048 = vmatpush1.xpose.msra.mxu0 0.0
    %1049 = vmatprep.subr.mxu0 0.0
    %1050 = vmatpush1.xpose.msra.mxu0 0.0
    %1051 = vmatprep.subr.mxu0 0.0
    %1052 = vmatpush1.xpose.msra.mxu0 0.0
    %1053 = vmatprep.subr.mxu0 0.0
    %1054 = vmatpush1.xpose.msra.mxu0 0.0
    %1055 = vmatprep.subr.mxu0 0.0
    %1056 = vmatpush1.xpose.msra.mxu0 0.0
    %1057 = vmatprep.subr.mxu0 0.0
    %1058 = vmatpush1.xpose.msra.mxu0 0.0
    %1059 = vmatprep.subr.mxu0 0.0
    %1060 = vmatpush1.xpose.msra.mxu0 0.0
    %1061 = vmatprep.subr.mxu0 0.0
    %1062 = vmatpush1.xpose.msra.mxu0 0.0
    %1063 = vmatprep.subr.mxu0 0.0
    %1064 = vmatpush1.xpose.msra.mxu0 0.0
    %1065 = vmatprep.subr.mxu0 0.0
    %1066 = vmatpush1.xpose.msra.mxu0 0.0
    %1067 = vmatprep.mubr.f32.mxu0 0.0
    %1068 = vmatmul.mubr.f32.gmra.mrb[0].mxu0 %v999
    %v1069 = vpop.f32.mrb[0].mxu0
    %v1070 = vadd.f32 0.0, %v1069
    %v1071 = vpop.f32.mrb[0].mxu0
    %1072 = vdwg.mxu0
    %v1073 = vmul.f32 %v1070, 0.17677669
    %v1074 = vsel %vm574, %v1073, -inf
    %1075 = vmax.xlane.f32.xlu0 %v1074
    %v1076 = vpop.xlane.xlu0 %1075
    %v1077 = vsub.f32 %v1073, %v1076
    %v1078 = vmul.f32 %v1077, 1.442695
    %v1079 = vpow.pop %v1078
    %v1080 = vsel %vm574, %v1079, 0.0
    %1081 = vadd.xlane.f32.xlu0 %v1080
    %v1082 = vpop.xlane.xlu0 %1081
    %v1083 = vrcp.pop %v1082
    %v1084 = vmul.f32 %v1079, %v1083
    %1085 = vrot.lane.b32.xlu0 %v988, 64
    %v1086 = vpop.permute.xlu0 %1085
    %v1089 = vsel %vm574, %v1084, 0
    %1091 = vmatprep.subr.mxu0 0.0
    %1092 = vmatpush1.msra.mxu0 %v1086
    %1093 = vmatprep.subr.mxu0 0.0
    %1094 = vmatpush1.msra.mxu0 0.0
    %1095 = vmatprep.subr.mxu0 0.0
    %1096 = vmatpush1.msra.mxu0 0.0
    %1097 = vmatprep.subr.mxu0 0.0
    %1098 = vmatpush1.msra.mxu0 0.0
    %1099 = vmatprep.subr.mxu0 0.0
    %1100 = vmatpush1.msra.mxu0 0.0
    %1101 = vmatprep.subr.mxu0 0.0
    %1102 = vmatpush1.msra.mxu0 0.0
    %1103 = vmatprep.subr.mxu0 0.0
    %1104 = vmatpush1.msra.mxu0 0.0
    %1105 = vmatprep.subr.mxu0 0.0
    %1106 = vmatpush1.msra.mxu0 0.0
    %1107 = vmatprep.subr.mxu0 0.0
    %1108 = vmatpush1.msra.mxu0 0.0
    %1109 = vmatprep.subr.mxu0 0.0
    %1110 = vmatpush1.msra.mxu0 0.0
    %1111 = vmatprep.subr.mxu0 0.0
    %1112 = vmatpush1.msra.mxu0 0.0
    %1113 = vmatprep.subr.mxu0 0.0
    %1114 = vmatpush1.msra.mxu0 0.0
    %1115 = vmatprep.subr.mxu0 0.0
    %1116 = vmatpush1.msra.mxu0 0.0
    %1117 = vmatprep.subr.mxu0 0.0
    %1118 = vmatpush1.msra.mxu0 0.0
    %1119 = vmatprep.subr.mxu0 0.0
    %1120 = vmatpush1.msra.mxu0 0.0
    %1121 = vmatprep.subr.mxu0 0.0
    %1122 = vmatpush1.msra.mxu0 0.0
    %1123 = vmatprep.subr.mxu0 0.0
    %1124 = vmatpush1.msra.mxu0 0.0
    %1125 = vmatprep.subr.mxu0 0.0
    %1126 = vmatpush1.msra.mxu0 0.0
    %1127 = vmatprep.subr.mxu0 0.0
    %1128 = vmatpush1.msra.mxu0 0.0
    %1129 = vmatprep.subr.mxu0 0.0
    %1130 = vmatpush1.msra.mxu0 0.0
    %1131 = vmatprep.subr.mxu0 0.0
    %1132 = vmatpush1.msra.mxu0 0.0
    %1133 = vmatprep.subr.mxu0 0.0
    %1134 = vmatpush1.msra.mxu0 0.0
    %1135 = vmatprep.subr.mxu0 0.0
    %1136 = vmatpush1.msra.mxu0 0.0
    %1137 = vmatprep.subr.mxu0 0.0
    %1138 = vmatpush1.msra.mxu0 0.0
    %1139 = vmatprep.subr.mxu0 0.0
    %1140 = vmatpush1.msra.mxu0 0.0
    %1141 = vmatprep.subr.mxu0 0.0
    %1142 = vmatpush1.msra.mxu0 0.0
    %1143 = vmatprep.subr.mxu0 0.0
    %1144 = vmatpush1.msra.mxu0 0.0
    %1145 = vmatprep.subr.mxu0 0.0
    %1146 = vmatpush1.msra.mxu0 0.0
    %1147 = vmatprep.subr.mxu0 0.0
    %1148 = vmatpush1.msra.mxu0 0.0
    %1149 = vmatprep.subr.mxu0 0.0
    %1150 = vmatpush1.msra.mxu0 0.0
    %1151 = vmatprep.subr.mxu0 0.0
    %1152 = vmatpush1.msra.mxu0 0.0
    %1153 = vmatprep.subr.mxu0 0.0
    %1154 = vmatpush1.msra.mxu0 0.0
    %1155 = vmatprep.mubr.f32.mxu0 0.0
    %1156 = vmatmul.mubr.f32.gmra.mrb[0].mxu0 %v1089
    %v1157 = vpop.f32.mrb[0].mxu0
    %v1158 = vadd.f32 0.0, %v1157
    %v1159 = vpop.f32.mrb[0].mxu0
    %1160 = vdwg.mxu0
    %1162 = vrot.lane.b32.xlu0 %v993, 96
    %v1163 = vpop.permute.xlu0 %1162
    %v1164 = vsel %vm160, %v993, 0
    %v1166 = vsel %vm160, %v1163, 0
    %1168 = vmatprep.subr.mxu0 0.0
    %1169 = vmatpush1.xpose.msra.mxu0 %v1166
    %1170 = vmatprep.subr.mxu0 0.0
    %1171 = vmatpush1.xpose.msra.mxu0 0.0
    %1172 = vmatprep.subr.mxu0 0.0
    %1173 = vmatpush1.xpose.msra.mxu0 0.0
    %1174 = vmatprep.subr.mxu0 0.0
    %1175 = vmatpush1.xpose.msra.mxu0 0.0
    %1176 = vmatprep.subr.mxu0 0.0
    %1177 = vmatpush1.xpose.msra.mxu0 0.0
    %1178 = vmatprep.subr.mxu0 0.0
    %1179 = vmatpush1.xpose.msra.mxu0 0.0
    %1180 = vmatprep.subr.mxu0 0.0
    %1181 = vmatpush1.xpose.msra.mxu0 0.0
    %1182 = vmatprep.subr.mxu0 0.0
    %1183 = vmatpush1.xpose.msra.mxu0 0.0
    %1184 = vmatprep.subr.mxu0 0.0
    %1185 = vmatpush1.xpose.msra.mxu0 0.0
    %1186 = vmatprep.subr.mxu0 0.0
    %1187 = vmatpush1.xpose.msra.mxu0 0.0
    %1188 = vmatprep.subr.mxu0 0.0
    %1189 = vmatpush1.xpose.msra.mxu0 0.0
    %1190 = vmatprep.subr.mxu0 0.0
    %1191 = vmatpush1.xpose.msra.mxu0 0.0
    %1192 = vmatprep.subr.mxu0 0.0
    %1193 = vmatpush1.xpose.msra.mxu0 0.0
    %1194 = vmatprep.subr.mxu0 0.0
    %1195 = vmatpush1.xpose.msra.mxu0 0.0
    %1196 = vmatprep.subr.mxu0 0.0
    %1197 = vmatpush1.xpose.msra.mxu0 0.0
    %1198 = vmatprep.subr.mxu0 0.0
    %1199 = vmatpush1.xpose.msra.mxu0 0.0
    %1200 = vmatprep.subr.mxu0 0.0
    %1201 = vmatpush1.xpose.msra.mxu0 0.0
    %1202 = vmatprep.subr.mxu0 0.0
    %1203 = vmatpush1.xpose.msra.mxu0 0.0
    %1204 = vmatprep.subr.mxu0 0.0
    %1205 = vmatpush1.xpose.msra.mxu0 0.0
    %1206 = vmatprep.subr.mxu0 0.0
    %1207 = vmatpush1.xpose.msra.mxu0 0.0
    %1208 = vmatprep.subr.mxu0 0.0
    %1209 = vmatpush1.xpose.msra.mxu0 0.0
    %1210 = vmatprep.subr.mxu0 0.0
    %1211 = vmatpush1.xpose.msra.mxu0 0.0
    %1212 = vmatprep.subr.mxu0 0.0
    %1213 = vmatpush1.xpose.msra.mxu0 0.0
    %1214 = vmatprep.subr.mxu0 0.0
    %1215 = vmatpush1.xpose.msra.mxu0 0.0
    %1216 = vmatprep.subr.mxu0 0.0
    %1217 = vmatpush1.xpose.msra.mxu0 0.0
    %1218 = vmatprep.subr.mxu0 0.0
    %1219 = vmatpush1.xpose.msra.mxu0 0.0
    %1220 = vmatprep.subr.mxu0 0.0
    %1221 = vmatpush1.xpose.msra.mxu0 0.0
    %1222 = vmatprep.subr.mxu0 0.0
    %1223 = vmatpush1.xpose.msra.mxu0 0.0
    %1224 = vmatprep.subr.mxu0 0.0
    %1225 = vmatpush1.xpose.msra.mxu0 0.0
    %1226 = vmatprep.subr.mxu0 0.0
    %1227 = vmatpush1.xpose.msra.mxu0 0.0
    %1228 = vmatprep.subr.mxu0 0.0
    %1229 = vmatpush1.xpose.msra.mxu0 0.0
    %1230 = vmatprep.subr.mxu0 0.0
    %1231 = vmatpush1.xpose.msra.mxu0 0.0
    %1232 = vmatprep.mubr.f32.mxu0 0.0
    %1233 = vmatmul.mubr.f32.gmra.mrb[0].mxu0 %v1164
    %v1234 = vpop.f32.mrb[0].mxu0
    %v1235 = vadd.f32 0.0, %v1234
    %v1236 = vpop.f32.mrb[0].mxu0
    %1237 = vdwg.mxu0
    %v1238 = vmul.f32 %v1235, 0.17677669
    %v1239 = vsel %vm574, %v1238, -inf
    %1240 = vmax.xlane.f32.xlu0 %v1239
    %v1241 = vpop.xlane.xlu0 %1240
    %v1242 = vsub.f32 %v1238, %v1241
    %v1243 = vmul.f32 %v1242, 1.442695
    %v1244 = vpow.pop %v1243
    %v1245 = vsel %vm574, %v1244, 0.0
    %1246 = vadd.xlane.f32.xlu0 %v1245
    %v1247 = vpop.xlane.xlu0 %1246
    %v1248 = vrcp.pop %v1247
    %v1249 = vmul.f32 %v1244, %v1248
    %1250 = vrot.lane.b32.xlu0 %v993, 64
    %v1251 = vpop.permute.xlu0 %1250
    %v1254 = vsel %vm574, %v1249, 0
    %1256 = vmatprep.subr.mxu0 0.0
    %1257 = vmatpush1.msra.mxu0 %v1251
    %1258 = vmatprep.subr.mxu0 0.0
    %1259 = vmatpush1.msra.mxu0 0.0
    %1260 = vmatprep.subr.mxu0 0.0
    %1261 = vmatpush1.msra.mxu0 0.0
    %1262 = vmatprep.subr.mxu0 0.0
    %1263 = vmatpush1.msra.mxu0 0.0
    %1264 = vmatprep.subr.mxu0 0.0
    %1265 = vmatpush1.msra.mxu0 0.0
    %1266 = vmatprep.subr.mxu0 0.0
    %1267 = vmatpush1.msra.mxu0 0.0
    %1268 = vmatprep.subr.mxu0 0.0
    %1269 = vmatpush1.msra.mxu0 0.0
    %1270 = vmatprep.subr.mxu0 0.0
    %1271 = vmatpush1.msra.mxu0 0.0
    %1272 = vmatprep.subr.mxu0 0.0
    %1273 = vmatpush1.msra.mxu0 0.0
    %1274 = vmatprep.subr.mxu0 0.0
    %1275 = vmatpush1.msra.mxu0 0.0
    %1276 = vmatprep.subr.mxu0 0.0
    %1277 = vmatpush1.msra.mxu0 0.0
    %1278 = vmatprep.subr.mxu0 0.0
    %1279 = vmatpush1.msra.mxu0 0.0
    %1280 = vmatprep.subr.mxu0 0.0
    %1281 = vmatpush1.msra.mxu0 0.0
    %1282 = vmatprep.subr.mxu0 0.0
    %1283 = vmatpush1.msra.mxu0 0.0
    %1284 = vmatprep.subr.mxu0 0.0
    %1285 = vmatpush1.msra.mxu0 0.0
    %1286 = vmatprep.subr.mxu0 0.0
    %1287 = vmatpush1.msra.mxu0 0.0
    %1288 = vmatprep.subr.mxu0 0.0
    %1289 = vmatpush1.msra.mxu0 0.0
    %1290 = vmatprep.subr.mxu0 0.0
    %1291 = vmatpush1.msra.mxu0 0.0
    %1292 = vmatprep.subr.mxu0 0.0
    %1293 = vmatpush1.msra.mxu0 0.0
    %1294 = vmatprep.subr.mxu0 0.0
    %1295 = vmatpush1.msra.mxu0 0.0
    %1296 = vmatprep.subr.mxu0 0.0
    %1297 = vmatpush1.msra.mxu0 0.0
    %1298 = vmatprep.subr.mxu0 0.0
    %1299 = vmatpush1.msra.mxu0 0.0
    %1300 = vmatprep.subr.mxu0 0.0
    %1301 = vmatpush1.msra.mxu0 0.0
    %1302 = vmatprep.subr.mxu0 0.0
    %1303 = vmatpush1.msra.mxu0 0.0
    %1304 = vmatprep.subr.mxu0 0.0
    %1305 = vmatpush1.msra.mxu0 0.0
    %1306 = vmatprep.subr.mxu0 0.0
    %1307 = vmatpush1.msra.mxu0 0.0
    %1308 = vmatprep.subr.mxu0 0.0
    %1309 = vmatpush1.msra.mxu0 0.0
    %1310 = vmatprep.subr.mxu0 0.0
    %1311 = vmatpush1.msra.mxu0 0.0
    %1312 = vmatprep.subr.mxu0 0.0
    %1313 = vmatpush1.msra.mxu0 0.0
    %1314 = vmatprep.subr.mxu0 0.0
    %1315 = vmatpush1.msra.mxu0 0.0
    %1316 = vmatprep.subr.mxu0 0.0
    %1317 = vmatpush1.msra.mxu0 0.0
    %1318 = vmatprep.subr.mxu0 0.0
    %1319 = vmatpush1.msra.mxu0 0.0
    %1320 = vmatprep.mubr.f32.mxu0 0.0
    %1321 = vmatmul.mubr.f32.gmra.mrb[0].mxu0 %v1254
    %v1322 = vpop.f32.mrb[0].mxu0
    %v1323 = vadd.f32 0.0, %v1322
    %v1324 = vpop.f32.mrb[0].mxu0
    %1325 = vdwg.mxu0
    %v1326 = vld [vmem:[#allocation11] sm:$0xff]
    %v1327 = vld [vmem:[#allocation11 + $0x8] sm:$0xff]
    %v1328 = vld [vmem:[#allocation11 + $0x10] sm:$0xff]
    %v1329 = vld [vmem:[#allocation11 + $0x18] sm:$0xff]
    %v1331 = vsel %vm160, %v1158, 0
    %v1334 = vsel %vm160, %v1323, 0
    %1336 = vmatprep.subr.mxu0 0.0
    %1337 = vmatpush1.msra.mxu0 %v1326
    %1338 = vmatprep.subr.mxu0 0.0
    %1339 = vmatpush1.msra.mxu0 %v1327
    %1340 = vmatprep.subr.mxu0 0.0
    %1341 = vmatpush1.msra.mxu0 %v1328
    %1342 = vmatprep.subr.mxu0 0.0
    %1343 = vmatpush1.msra.mxu0 %v1329
    %1344 = vmatprep.subr.mxu0 0.0
    %1345 = vmatpush1.msra.mxu0 0.0
    %1346 = vmatprep.subr.mxu0 0.0
    %1347 = vmatpush1.msra.mxu0 0.0
    %1348 = vmatprep.subr.mxu0 0.0
    %1349 = vmatpush1.msra.mxu0 0.0
    %1350 = vmatprep.subr.mxu0 0.0
    %1351 = vmatpush1.msra.mxu0 0.0
    %1352 = vmatprep.subr.mxu0 0.0
    %1353 = vmatpush1.msra.mxu0 0.0
    %1354 = vmatprep.subr.mxu0 0.0
    %1355 = vmatpush1.msra.mxu0 0.0
    %1356 = vmatprep.subr.mxu0 0.0
    %1357 = vmatpush1.msra.mxu0 0.0
    %1358 = vmatprep.subr.mxu0 0.0
    %1359 = vmatpush1.msra.mxu0 0.0
    %1360 = vmatprep.subr.mxu0 0.0
    %1361 = vmatpush1.msra.mxu0 0.0
    %1362 = vmatprep.subr.mxu0 0.0
    %1363 = vmatpush1.msra.mxu0 0.0
    %1364 = vmatprep.subr.mxu0 0.0
    %1365 = vmatpush1.msra.mxu0 0.0
    %1366 = vmatprep.subr.mxu0 0.0
    %1367 = vmatpush1.msra.mxu0 0.0
    %1368 = vmatprep.subr.mxu0 0.0
    %1369 = vmatpush1.msra.mxu0 0.0
    %1370 = vmatprep.subr.mxu0 0.0
    %1371 = vmatpush1.msra.mxu0 0.0
    %1372 = vmatprep.subr.mxu0 0.0
    %1373 = vmatpush1.msra.mxu0 0.0
    %1374 = vmatprep.subr.mxu0 0.0
    %1375 = vmatpush1.msra.mxu0 0.0
    %1376 = vmatprep.subr.mxu0 0.0
    %1377 = vmatpush1.msra.mxu0 0.0
    %1378 = vmatprep.subr.mxu0 0.0
    %1379 = vmatpush1.msra.mxu0 0.0
    %1380 = vmatprep.subr.mxu0 0.0
    %1381 = vmatpush1.msra.mxu0 0.0
    %1382 = vmatprep.subr.mxu0 0.0
    %1383 = vmatpush1.msra.mxu0 0.0
    %1384 = vmatprep.subr.mxu0 0.0
    %1385 = vmatpush1.msra.mxu0 0.0
    %1386 = vmatprep.subr.mxu0 0.0
    %1387 = vmatpush1.msra.mxu0 0.0
    %1388 = vmatprep.subr.mxu0 0.0
    %1389 = vmatpush1.msra.mxu0 0.0
    %1390 = vmatprep.subr.mxu0 0.0
    %1391 = vmatpush1.msra.mxu0 0.0
    %1392 = vmatprep.subr.mxu0 0.0
    %1393 = vmatpush1.msra.mxu0 0.0
    %1394 = vmatprep.subr.mxu0 0.0
    %1395 = vmatpush1.msra.mxu0 0.0
    %1396 = vmatprep.subr.mxu0 0.0
    %1397 = vmatpush1.msra.mxu0 0.0
    %1398 = vmatprep.subr.mxu0 0.0
    %1399 = vmatpush1.msra.mxu0 0.0
    %1400 = vmatprep.mubr.f32.mxu0 0.0
    %1401 = vmatmul.mubr.f32.gmra.mrb[0].mxu0 %v1331
    %v1402 = vpop.f32.mrb[0].mxu0
    %v1403 = vadd.f32 0.0, %v1402
    %v1404 = vpop.f32.mrb[0].mxu0
    %1405 = vmatprep.mubr.f32.mxu0 0.0
    %1406 = vmatmul.mubr.f32.gmra.mrb[0].mxu0 %v1334
    %v1407 = vpop.f32.mrb[0].mxu0
    %v1408 = vadd.f32 0.0, %v1407
    %v1409 = vpop.f32.mrb[0].mxu0
    %1410 = vdwg.mxu0
    %v1411 = vld [vmem:[#allocation13] sm:$0xff]
    %v1412 = vld [vmem:[#allocation13 + $0x8] sm:$0xff]
    %v1413 = vld [vmem:[#allocation13 + $0x10] sm:$0xff]
    %v1414 = vld [vmem:[#allocation13 + $0x18] sm:$0xff]
    %v1415 = vld [vmem:[%s10] sm:$0x1]
    %v1417 = vlaneseq
    %v1418 = vshrl.u32 %v1417, 7
    %v1419 = vsub.s32 0, %v1418
    %v1420 = vrot.slane %v1415, %v1419
    %v1423 = vsel %vm160, %v1403, 0
    %v1426 = vsel %vm160, %v1408, 0
    %1428 = vmatprep.subr.mxu0 0.0
    %1429 = vmatpush1.msra.mxu0 %v1411
    %1430 = vmatprep.subr.mxu0 0.0
    %1431 = vmatpush1.msra.mxu0 %v1412
    %1432 = vmatprep.subr.mxu0 0.0
    %1433 = vmatpush1.msra.mxu0 %v1413
    %1434 = vmatprep.subr.mxu0 0.0
    %1435 = vmatpush1.msra.mxu0 %v1414
    %1436 = vmatprep.subr.mxu0 0.0
    %1437 = vmatpush1.msra.mxu0 0.0
    %1438 = vmatprep.subr.mxu0 0.0
    %1439 = vmatpush1.msra.mxu0 0.0
    %1440 = vmatprep.subr.mxu0 0.0
    %1441 = vmatpush1.msra.mxu0 0.0
    %1442 = vmatprep.subr.mxu0 0.0
    %1443 = vmatpush1.msra.mxu0 0.0
    %1444 = vmatprep.subr.mxu0 0.0
    %1445 = vmatpush1.msra.mxu0 0.0
    %1446 = vmatprep.subr.mxu0 0.0
    %1447 = vmatpush1.msra.mxu0 0.0
    %1448 = vmatprep.subr.mxu0 0.0
    %1449 = vmatpush1.msra.mxu0 0.0
    %1450 = vmatprep.subr.mxu0 0.0
    %1451 = vmatpush1.msra.mxu0 0.0
    %1452 = vmatprep.subr.mxu0 0.0
    %1453 = vmatpush1.msra.mxu0 0.0
    %1454 = vmatprep.subr.mxu0 0.0
    %1455 = vmatpush1.msra.mxu0 0.0
    %1456 = vmatprep.subr.mxu0 0.0
    %1457 = vmatpush1.msra.mxu0 0.0
    %1458 = vmatprep.subr.mxu0 0.0
    %1459 = vmatpush1.msra.mxu0 0.0
    %1460 = vmatprep.subr.mxu0 0.0
    %1461 = vmatpush1.msra.mxu0 0.0
    %1462 = vmatprep.subr.mxu0 0.0
    %1463 = vmatpush1.msra.mxu0 0.0
    %1464 = vmatprep.subr.mxu0 0.0
    %1465 = vmatpush1.msra.mxu0 0.0
    %1466 = vmatprep.subr.mxu0 0.0
    %1467 = vmatpush1.msra.mxu0 0.0
    %1468 = vmatprep.subr.mxu0 0.0
    %1469 = vmatpush1.msra.mxu0 0.0
    %1470 = vmatprep.subr.mxu0 0.0
    %1471 = vmatpush1.msra.mxu0 0.0
    %1472 = vmatprep.subr.mxu0 0.0
    %1473 = vmatpush1.msra.mxu0 0.0
    %1474 = vmatprep.subr.mxu0 0.0
    %1475 = vmatpush1.msra.mxu0 0.0
    %1476 = vmatprep.subr.mxu0 0.0
    %1477 = vmatpush1.msra.mxu0 0.0
    %1478 = vmatprep.subr.mxu0 0.0
    %1479 = vmatpush1.msra.mxu0 0.0
    %1480 = vmatprep.subr.mxu0 0.0
    %1481 = vmatpush1.msra.mxu0 0.0
    %1482 = vmatprep.subr.mxu0 0.0
    %1483 = vmatpush1.msra.mxu0 0.0
    %1484 = vmatprep.subr.mxu0 0.0
    %1485 = vmatpush1.msra.mxu0 0.0
    %1486 = vmatprep.subr.mxu0 0.0
    %1487 = vmatpush1.msra.mxu0 0.0
    %1488 = vmatprep.subr.mxu0 0.0
    %1489 = vmatpush1.msra.mxu0 0.0
    %1490 = vmatprep.subr.mxu0 0.0
    %1491 = vmatpush1.msra.mxu0 0.0
    %1492 = vmatprep.mubr.f32.mxu0 0.0
    %1493 = vmatmul.mubr.f32.gmra.mrb[0].mxu0 %v1423
    %v1494 = vpop.f32.mrb[0].mxu0
    %v1495 = vadd.f32 %v1420, %v1494
    %v1496 = vpop.f32.mrb[0].mxu0
    %1497 = vmatprep.mubr.f32.mxu0 0.0
    %1498 = vmatmul.mubr.f32.gmra.mrb[0].mxu0 %v1426
    %v1499 = vpop.f32.mrb[0].mxu0
    %v1500 = vadd.f32 %v1420, %v1499
    %v1501 = vpop.f32.mrb[0].mxu0
    %1502 = vdwg.mxu0
    %v1503 = vmax.f32 %v1495, 0.0
    %v1504 = vmax.f32 %v1500, 0.0
    %v1505 = vsel %vm160, %v1503, 0.0
    %v1506 = vrot.slane %v1505, 4
    %v1507 = vadd.f32 %v1505, %v1506
    %v1508 = vrot.slane %v1507, 2
    %v1509 = vadd.f32 %v1507, %v1508
    %v1510 = vrot.slane %v1509, 1
    %v1511 = vadd.f32 %v1509, %v1510
    %v1512 = vmul.f32 %v1511, 0.125
    %v1513 = vsel %vm160, %v1504, 0.0
    %v1514 = vrot.slane %v1513, 4
    %v1515 = vadd.f32 %v1513, %v1514
    %v1516 = vrot.slane %v1515, 2
    %v1517 = vadd.f32 %v1515, %v1516
    %v1518 = vrot.slane %v1517, 1
    %v1519 = vadd.f32 %v1517, %v1518
    %v1520 = vmul.f32 %v1519, 0.125
    %vm1521 = vcmask 1040384
    %v1522 = vsel %vm1521, %v1512, %v1520
    %v1523 = vld [vmem:[%s11] sm:$0xff]
    %v1524 = vld [vmem:[%s11 + $0x8] sm:$0xff]
    %v1525 = vld [vmem:[%s11 + $0x10] sm:$0xff]
    %v1526 = vld [vmem:[%s11 + $0x18] sm:$0xff]
    %v1527 = vld [vmem:[#allocation14] sm:$0x1]
    %v1529 = vlaneseq
    %v1530 = vshrl.u32 %v1529, 7
    %v1531 = vsub.s32 0, %v1530
    %v1532 = vrot.slane %v1527, %v1531
    %v1535 = vsel %vm160, %v1522, 0
    %1537 = vmatprep.subr.mxu0 0.0
    %1538 = vmatpush1.msra.mxu0 %v1523
    %1539 = vmatprep.subr.mxu0 0.0
    %1540 = vmatpush1.msra.mxu0 %v1524
    %1541 = vmatprep.subr.mxu0 0.0
    %1542 = vmatpush1.msra.mxu0 %v1525
    %1543 = vmatprep.subr.mxu0 0.0
    %1544 = vmatpush1.msra.mxu0 %v1526
    %1545 = vmatprep.subr.mxu0 0.0
    %1546 = vmatpush1.msra.mxu0 0.0
    %1547 = vmatprep.subr.mxu0 0.0
    %1548 = vmatpush1.msra.mxu0 0.0
    %1549 = vmatprep.subr.mxu0 0.0
    %1550 = vmatpush1.msra.mxu0 0.0
    %1551 = vmatprep.subr.mxu0 0.0
    %1552 = vmatpush1.msra.mxu0 0.0
    %1553 = vmatprep.subr.mxu0 0.0
    %1554 = vmatpush1.msra.mxu0 0.0
    %1555 = vmatprep.subr.mxu0 0.0
    %1556 = vmatpush1.msra.mxu0 0.0
    %1557 = vmatprep.subr.mxu0 0.0
    %1558 = vmatpush1.msra.mxu0 0.0
    %1559 = vmatprep.subr.mxu0 0.0
    %1560 = vmatpush1.msra.mxu0 0.0
    %1561 = vmatprep.subr.mxu0 0.0
    %1562 = vmatpush1.msra.mxu0 0.0
    %1563 = vmatprep.subr.mxu0 0.0
    %1564 = vmatpush1.msra.mxu0 0.0
    %1565 = vmatprep.subr.mxu0 0.0
    %1566 = vmatpush1.msra.mxu0 0.0
    %1567 = vmatprep.subr.mxu0 0.0
    %1568 = vmatpush1.msra.mxu0 0.0
    %1569 = vmatprep.subr.mxu0 0.0
    %1570 = vmatpush1.msra.mxu0 0.0
    %1571 = vmatprep.subr.mxu0 0.0
    %1572 = vmatpush1.msra.mxu0 0.0
    %1573 = vmatprep.subr.mxu0 0.0
    %1574 = vmatpush1.msra.mxu0 0.0
    %1575 = vmatprep.subr.mxu0 0.0
    %1576 = vmatpush1.msra.mxu0 0.0
    %1577 = vmatprep.subr.mxu0 0.0
    %1578 = vmatpush1.msra.mxu0 0.0
    %1579 = vmatprep.subr.mxu0 0.0
    %1580 = vmatpush1.msra.mxu0 0.0
    %1581 = vmatprep.subr.mxu0 0.0
    %1582 = vmatpush1.msra.mxu0 0.0
    %1583 = vmatprep.subr.mxu0 0.0
    %1584 = vmatpush1.msra.mxu0 0.0
    %1585 = vmatprep.subr.mxu0 0.0
    %1586 = vmatpush1.msra.mxu0 0.0
    %1587 = vmatprep.subr.mxu0 0.0
    %1588 = vmatpush1.msra.mxu0 0.0
    %1589 = vmatprep.subr.mxu0 0.0
    %1590 = vmatpush1.msra.mxu0 0.0
    %1591 = vmatprep.subr.mxu0 0.0
    %1592 = vmatpush1.msra.mxu0 0.0
    %1593 = vmatprep.subr.mxu0 0.0
    %1594 = vmatpush1.msra.mxu0 0.0
    %1595 = vmatprep.subr.mxu0 0.0
    %1596 = vmatpush1.msra.mxu0 0.0
    %1597 = vmatprep.subr.mxu0 0.0
    %1598 = vmatpush1.msra.mxu0 0.0
    %1599 = vmatprep.subr.mxu0 0.0
    %1600 = vmatpush1.msra.mxu0 0.0
    %1601 = vmatprep.mubr.f32.mxu0 0.0
    %1602 = vmatmul.mubr.f32.gmra.mrb[0].mxu0 %v1535
    %v1603 = vpop.f32.mrb[0].mxu0
    %v1604 = vadd.f32 %v1532, %v1603
    %v1605 = vpop.f32.mrb[0].mxu0
    %1606 = vdwg.mxu0
    %vm1607 = vcmask 58368
    %1608 = vst.msk [vmem:[#allocation16] sm:$0x3] %vm1607, %v1604
    // Predicated region
    $region86: #{lam_forward.1} parent=1 // pred_check
      _
    $region87: #{lam_forward.1} parent=1 // pred_check_branch
      %1610 = sbr.rel (0) target = $region89
    $region88: #{lam_forward.1} parent=1 // pred_region
      %s1612 = ssub.s32 32, 32
      %1613 = vsyncadd [#allocation4], %s1612
      %s1615 = sshll.u32 [#allocation16], 4
      %s1616 = int_to_ptr.vmem [resolvable:$true] %s1615
      %1618 = dma.vmem_to_hbm [thread:$0]  %s1616, 32, %s13, [#allocation4]
    $region89: #{lam_forward.1} parent=1 // pred_fallthru
      _
    // Predicated region
    $region90: #{lam_forward.1} parent=1 // pred_check
      _
    $region91: #{lam_forward.1} parent=1 // pred_check_branch
      %1620 = sbr.rel (0) target = $region93
    $region92: #{lam_forward.1} parent=1 // pred_region
      %1621 = dma.done [#allocation4], 32
    $region93: #{lam_forward.1} parent=1 // pred_fallthru
      _
    %1622 = vsyncpa [#allocation3], 1
    %1623 = vsyncpa [#allocation6], 1
    %1624 = vsyncpa [#allocation9], 1
    %1625 = vsyncpa [#allocation12], 1
    %1626 = vsyncpa [#allocation15], 1
    %1627 = vsyncpa [#allocation4], 1

</llo_original>
